<compile_context>
chip_gen: v7x
topology: tpu7x:2x2x1
jax: 0.10.0
libtpu: 0.0.40
codegen_flags: <defaults>
</compile_context>

<pallas_src>
import math

import jax
import jax.numpy as jnp
from jax.experimental import pallas as pl
from jax.experimental.pallas import tpu as pltpu


# ----------------------------------------------------------------------------- helpers
def _mish(x):
    # Mish(x) = x * tanh(softplus(x)); exp/log/tanh all go to the EUP.
    return x * jnp.tanh(jnp.log1p(jnp.exp(x)))


# ----------------------------------------------------------------------------- kernel
def _diffusion_loop_kernel(
    coef_ref,                                   # SMEM (T, 8) scalar-prefetched per-step table
    xT_ref, s_ref, n_ref, emb2_ref, off_ref,    # data + time tables
    w1_ref, b1_ref, w2_ref, b2_ref,             # time MLP
    w3a_ref, w3s_ref, w3t_ref, b3_ref,          # mid layer 1 (split by input segment)
    w4_ref, b4_ref, w5_ref, b5_ref,             # mid layers 2, 3
    w6_ref, b6_ref,                             # output layer
    out_ref,                                    # carried x_t (output-as-accumulator)
):
    f32 = jnp.float32
    s = pl.program_id(1)
    last = pl.num_programs(1) - 1

    # First reverse step: x_t <- x_T for this batch tile.
    @pl.when(s == 0)
    def _():
        out_ref[...] = xT_ref[...]

    x = out_ref[...]            # (TB, A)  carried in VMEM across the timestep axis
    state = s_ref[...]          # (TB, S)

    # per-timestep scalars (SMEM, dynamic grid index)
    c_recip = coef_ref[s, 0]
    c_recipm = coef_ref[s, 1]
    c_pm1 = coef_ref[s, 2]
    c_pm2 = coef_ref[s, 3]
    c_std = coef_ref[s, 4]
    c_mask = coef_ref[s, 5]
    t_val = coef_ref[s, 6]

    # Sinusoidal positional encoding (batch-invariant), cos folded into sin:
    #   [sin(t*w), cos(t*w)] == sin(t*[w, w] + [0, pi/2])   -> (1, t_dim)
    t_feat = jnp.sin(t_val * emb2_ref[...] + off_ref[...])

    # time MLP: Linear(t_dim, 2*t_dim) -> Mish -> Linear(2*t_dim, t_dim), at batch 1.
    h_t = _mish(jnp.dot(t_feat, w1_ref[...], preferred_element_type=f32) + b1_ref[...])
    t_emb = jnp.dot(h_t, w2_ref[...], preferred_element_type=f32) + b2_ref[...]
    # fold the time contribution + bias of mid layer 1 into a single broadcast row (1, H)
    t_row = jnp.dot(t_emb, w3t_ref[...], preferred_element_type=f32) + b3_ref[...]

    # mid layer 1: concat([x, state, t_emb]) @ W3 == x@W3a + state@W3s + t_emb@W3t
    h = (jnp.dot(x, w3a_ref[...], preferred_element_type=f32)
         + jnp.dot(state, w3s_ref[...], preferred_element_type=f32)
         + t_row)
    h = _mish(h)
    h = _mish(jnp.dot(h, w4_ref[...], preferred_element_type=f32) + b4_ref[...])
    h = _mish(jnp.dot(h, w5_ref[...], preferred_element_type=f32) + b5_ref[...])
    noise_hat = jnp.dot(h, w6_ref[...], preferred_element_type=f32) + b6_ref[...]   # (TB, A)

    # DDPM posterior update (one p_sample step), clip_denoised=True.
    x_recon = jnp.clip(c_recip * x - c_recipm * noise_hat, -1.0, 1.0)
    mean = c_pm1 * x + c_pm2 * x_recon
    x_next = mean + (c_std * c_mask) * n_ref[0]

    out_ref[...] = x_next

    # final clamp of the sampled action (written back to HBM only once, here)
    @pl.when(s == last)
    def _():
        out_ref[...] = jnp.clip(x_next, -1.0, 1.0)


# ----------------------------------------------------------------------------- wrapper
def diffusion_sample_pallas(x_T, noises, state, params, coef_table, emb2, off):
    """Full reverse-diffusion sampling (all T steps) in a single pallas_call.

    noises: (T, B, A) per-step Gaussian noise indexed by the ORIGINAL step number.
    coef_table: (T, 8) per-step scalars already in grid order (row s == step T-1-s).
    """
    B, A = x_T.shape
    S = state.shape[1]
    t_dim = emb2.shape[1]
    H = params["w4"].shape[0]
    T = coef_table.shape[0]

    # Row s of the grid handles diffusion step T-1-s; pre-reverse the noise once on host.
    noises_rev = noises[::-1]

    # Batch tiling: a single full block at demo sizes; at large B it tiles (divisible by 8)
    # and the "parallel" axis shards across TensorCores while staying far under VMEM.
    tile_b = B if B <= 1024 else 1024
    assert B % tile_b == 0, "batch must be divisible by the batch tile"
    grid = (B // tile_b, T)

    bmap = lambda i, s, coef: (i, 0)        # batch-tiled, timestep-resident operands
    nmap = lambda i, s, coef: (s, i, 0)     # per-step noise
    wmap = lambda i, s, coef: (0, 0)        # resident weights / tables

    in_specs = [
        pl.BlockSpec((tile_b, A), bmap),            # x_T
        pl.BlockSpec((tile_b, S), bmap),            # state
        pl.BlockSpec((1, tile_b, A), nmap),         # per-step noise (reversed order)
        pl.BlockSpec((1, t_dim), wmap),             # emb2 (doubled frequencies)
        pl.BlockSpec((1, t_dim), wmap),             # off  (0 | pi/2 phase offsets)
        pl.BlockSpec((t_dim, 2 * t_dim), wmap), pl.BlockSpec((1, 2 * t_dim), wmap),   # w1,b1
        pl.BlockSpec((2 * t_dim, t_dim), wmap), pl.BlockSpec((1, t_dim), wmap),       # w2,b2
        pl.BlockSpec((A, H), wmap), pl.BlockSpec((S, H), wmap),                       # w3a,w3s
        pl.BlockSpec((t_dim, H), wmap), pl.BlockSpec((1, H), wmap),                   # w3t,b3
        pl.BlockSpec((H, H), wmap), pl.BlockSpec((1, H), wmap),                       # w4,b4
        pl.BlockSpec((H, H), wmap), pl.BlockSpec((1, H), wmap),                       # w5,b5
        pl.BlockSpec((H, A), wmap), pl.BlockSpec((1, A), wmap),                       # w6,b6
    ]
    out_specs = pl.BlockSpec((tile_b, A), bmap)

    grid_spec = pltpu.PrefetchScalarGridSpec(
        num_scalar_prefetch=1,
        grid=grid,
        in_specs=in_specs,
        out_specs=out_specs,
    )

    return pl.pallas_call(
        _diffusion_loop_kernel,
        out_shape=jax.ShapeDtypeStruct((B, A), jnp.float32),
        grid_spec=grid_spec,
        compiler_params=pltpu.CompilerParams(
            dimension_semantics=("parallel", "arbitrary")),
    )(coef_table, x_T, state, noises_rev, emb2, off,
      params["w1"], params["b1"], params["w2"], params["b2"],
      params["w3a"], params["w3s"], params["w3t"], params["b3"],
      params["w4"], params["b4"], params["w5"], params["b5"],
      params["w6"], params["b6"])


# ----------------------------------------------------------------------------- module setup
def make_time_tables(t_dim):
    assert t_dim % 2 == 0 and t_dim >= 4   # guard half_dim - 1 == 0 division
    half = t_dim // 2
    scale = math.log(10000.0) / (half - 1)
    emb_half = jnp.exp(jnp.arange(half, dtype=jnp.float32) * -scale)               # (half,)
    emb2 = jnp.concatenate([emb_half, emb_half])[None, :]                          # (1, t_dim)
    off = jnp.concatenate([jnp.zeros((half,), jnp.float32),
                           jnp.full((half,), math.pi / 2, jnp.float32)])[None, :]  # (1, t_dim)
    return emb_half, emb2, off


def make_schedule(T):
    betas = jnp.linspace(1e-4, 0.02, T, dtype=jnp.float32)
    alphas = 1.0 - betas
    acp = jnp.cumprod(alphas)
    acp_prev = jnp.concatenate([jnp.ones((1,), jnp.float32), acp[:-1]])
    return dict(
        sqrt_recip=jnp.sqrt(1.0 / acp),
        sqrt_recipm=jnp.sqrt(1.0 / acp - 1.0),
        # matches the module: clamp of the LOG value at 1e-20
        post_log_var=jnp.clip(jnp.log(betas * (1.0 - acp_prev) / (1.0 - acp)), 1e-20),
        pmc1=betas * jnp.sqrt(acp_prev) / (1.0 - acp),
        pmc2=(1.0 - acp_prev) * jnp.sqrt(alphas) / (1.0 - acp),
    )


def make_coef_table(sched, T):
    """(T, 8) per-step scalar table in grid order: row s corresponds to step T-1-s.
    columns: [sqrt_recip, sqrt_recipm, pmc1, pmc2, std, noise_mask, t_value, pad]."""
    steps = jnp.arange(T - 1, -1, -1)
    mask = (steps > 0).astype(jnp.float32)
    return jnp.stack([
        sched["sqrt_recip"][steps],
        sched["sqrt_recipm"][steps],
        sched["pmc1"][steps],
        sched["pmc2"][steps],
        jnp.exp(0.5 * sched["post_log_var"][steps]),
        mask,
        steps.astype(jnp.float32),
        jnp.zeros((T,), jnp.float32),
    ], axis=1).astype(jnp.float32)


def init_mlp_params(key, state_dim, action_dim, hidden_dim, t_dim):
    """kaiming_normal_ weights (std = sqrt(2/fan_in)), zero biases, stored as (in, out)."""
    def kaiming(k, fan_in, fan_out):
        return math.sqrt(2.0 / fan_in) * jax.random.normal(k, (fan_in, fan_out), jnp.float32)
    ks = jax.random.split(key, 6)
    in_dim = action_dim + state_dim + t_dim
    w3 = kaiming(ks[2], in_dim, hidden_dim)
    return dict(
        w1=kaiming(ks[0], t_dim, 2 * t_dim), b1=jnp.zeros((1, 2 * t_dim), jnp.float32),
        w2=kaiming(ks[1], 2 * t_dim, t_dim), b2=jnp.zeros((1, t_dim), jnp.float32),
        # first mid-layer weight split by input segment to avoid any in-kernel concat
        w3a=w3[:action_dim],
        w3s=w3[action_dim:action_dim + state_dim],
        w3t=w3[action_dim + state_dim:],
        b3=jnp.zeros((1, hidden_dim), jnp.float32),
        w4=kaiming(ks[3], hidden_dim, hidden_dim), b4=jnp.zeros((1, hidden_dim), jnp.float32),
        w5=kaiming(ks[4], hidden_dim, hidden_dim), b5=jnp.zeros((1, hidden_dim), jnp.float32),
        w6=kaiming(ks[5], hidden_dim, action_dim), b6=jnp.zeros((1, action_dim), jnp.float32),
    )


# ----------------------------------------------------------------------------- pure-JAX reference
def _mish_ref(x):
    return x * jnp.tanh(jnp.log1p(jnp.exp(x)))


def _model_ref(x, t, state, params, emb_half):
    hp = jax.lax.Precision.HIGHEST
    phase = t[:, None] * emb_half[None, :]
    t_feat = jnp.concatenate([jnp.sin(phase), jnp.cos(phase)], axis=-1)
    h = _mish_ref(jnp.dot(t_feat, params["w1"], precision=hp) + params["b1"])
    t_emb = jnp.dot(h, params["w2"], precision=hp) + params["b2"]
    w3 = jnp.concatenate([params["w3a"], params["w3s"], params["w3t"]], axis=0)
    inp = jnp.concatenate([x, state, t_emb], axis=-1)
    h = _mish_ref(jnp.dot(inp, w3, precision=hp) + params["b3"])
    h = _mish_ref(jnp.dot(h, params["w4"], precision=hp) + params["b4"])
    h = _mish_ref(jnp.dot(h, params["w5"], precision=hp) + params["b5"])
    return jnp.dot(h, params["w6"], precision=hp) + params["b6"]


def diffusion_sample_reference(x_T, noises, state, params, sched, emb_half, T):
    x = x_T
    B = state.shape[0]
    for step in reversed(range(T)):
        t = jnp.full((B,), float(step), dtype=jnp.float32)
        noise_hat = _model_ref(x, t, state, params, emb_half)
        x_recon = jnp.clip(sched["sqrt_recip"][step] * x
                           - sched["sqrt_recipm"][step] * noise_hat, -1.0, 1.0)
        mean = sched["pmc1"][step] * x + sched["pmc2"][step] * x_recon
        std = jnp.exp(0.5 * sched["post_log_var"][step])
        mask = 0.0 if step == 0 else 1.0
        x = mean + std * mask * noises[step]
    return jnp.clip(x, -1.0, 1.0)


# ----------------------------------------------------------------------------- main
if __name__ == "__main__":
    key = jax.random.PRNGKey(0)
    B, state_dim, action_dim, hidden_dim, T = 8, 16, 8, 32, 5
    t_dim = 16   # fixed by the module (MLP is built with t_dim=16)

    k_params, k_state, k_xT, k_noise = jax.random.split(key, 4)
    params = init_mlp_params(k_params, state_dim, action_dim, hidden_dim, t_dim)
    sched = make_schedule(T)
    emb_half, emb2, off = make_time_tables(t_dim)
    coef_table = make_coef_table(sched, T)

    state = jax.random.normal(k_state, (B, state_dim), dtype=jnp.float32)
    x_T = jax.random.normal(k_xT, (B, action_dim), dtype=jnp.float32)       # torch.randn(shape)
    noises = jax.random.normal(k_noise, (T, B, action_dim), dtype=jnp.float32)

    out = diffusion_sample_pallas(x_T, noises, state, params, coef_table, emb2, off)
    out = jax.block_until_ready(out)

    ref = diffusion_sample_reference(x_T, noises, state, params, sched, emb_half, T)
    assert out.shape == (B, action_dim)
    assert jnp.allclose(out, ref, atol=5e-3, rtol=5e-3), float(jnp.max(jnp.abs(out - ref)))
    print("KERNEL_OK")
</pallas_src>

<mosaic_0001>
module attributes {stable_mosaic.version = 11 : i64} {
  func.func @_diffusion_loop_kernel(%arg0: i32, %arg1: i32, %arg2: memref<5x8xf32, #tpu.memory_space<smem>>, %arg3: memref<8x8xf32, #tpu.memory_space<vmem>>, %arg4: memref<8x16xf32, #tpu.memory_space<vmem>>, %arg5: memref<1x8x8xf32, #tpu.memory_space<vmem>>, %arg6: memref<1x16xf32, #tpu.memory_space<vmem>>, %arg7: memref<1x16xf32, #tpu.memory_space<vmem>>, %arg8: memref<16x32xf32, #tpu.memory_space<vmem>>, %arg9: memref<1x32xf32, #tpu.memory_space<vmem>>, %arg10: memref<32x16xf32, #tpu.memory_space<vmem>>, %arg11: memref<1x16xf32, #tpu.memory_space<vmem>>, %arg12: memref<8x32xf32, #tpu.memory_space<vmem>>, %arg13: memref<16x32xf32, #tpu.memory_space<vmem>>, %arg14: memref<16x32xf32, #tpu.memory_space<vmem>>, %arg15: memref<1x32xf32, #tpu.memory_space<vmem>>, %arg16: memref<32x32xf32, #tpu.memory_space<vmem>>, %arg17: memref<1x32xf32, #tpu.memory_space<vmem>>, %arg18: memref<32x32xf32, #tpu.memory_space<vmem>>, %arg19: memref<1x32xf32, #tpu.memory_space<vmem>>, %arg20: memref<32x8xf32, #tpu.memory_space<vmem>>, %arg21: memref<1x8xf32, #tpu.memory_space<vmem>>, %arg22: memref<8x8xf32, #tpu.memory_space<vmem>>) attributes {dimension_semantics = [#tpu.dimension_semantics<parallel>, #tpu.dimension_semantics<arbitrary>], iteration_bounds = array<i64: 1, 5>, scalar_prefetch = 1 : i64, scratch_operands = 0 : i64, tpu.core_type = #tpu.core_type<tc>, window_params = [{transform_indices = @transform_0, window_bounds = array<i64: 8, 8>}, {transform_indices = @transform_1, window_bounds = array<i64: 8, 16>}, {transform_indices = @transform_2, window_bounds = array<i64: 1, 8, 8>}, {pipeline_mode = #tpu.pipeline_mode<synchronous>, transform_indices = @transform_3, window_bounds = array<i64: 1, 16>}, {pipeline_mode = #tpu.pipeline_mode<synchronous>, transform_indices = @transform_4, window_bounds = array<i64: 1, 16>}, {pipeline_mode = #tpu.pipeline_mode<synchronous>, transform_indices = @transform_5, window_bounds = array<i64: 16, 32>}, {pipeline_mode = #tpu.pipeline_mode<synchronous>, transform_indices = @transform_6, window_bounds = array<i64: 1, 32>}, {pipeline_mode = #tpu.pipeline_mode<synchronous>, transform_indices = @transform_7, window_bounds = array<i64: 32, 16>}, {pipeline_mode = #tpu.pipeline_mode<synchronous>, transform_indices = @transform_8, window_bounds = array<i64: 1, 16>}, {pipeline_mode = #tpu.pipeline_mode<synchronous>, transform_indices = @transform_9, window_bounds = array<i64: 8, 32>}, {pipeline_mode = #tpu.pipeline_mode<synchronous>, transform_indices = @transform_10, window_bounds = array<i64: 16, 32>}, {pipeline_mode = #tpu.pipeline_mode<synchronous>, transform_indices = @transform_11, window_bounds = array<i64: 16, 32>}, {pipeline_mode = #tpu.pipeline_mode<synchronous>, transform_indices = @transform_12, window_bounds = array<i64: 1, 32>}, {pipeline_mode = #tpu.pipeline_mode<synchronous>, transform_indices = @transform_13, window_bounds = array<i64: 32, 32>}, {pipeline_mode = #tpu.pipeline_mode<synchronous>, transform_indices = @transform_14, window_bounds = array<i64: 1, 32>}, {pipeline_mode = #tpu.pipeline_mode<synchronous>, transform_indices = @transform_15, window_bounds = array<i64: 32, 32>}, {pipeline_mode = #tpu.pipeline_mode<synchronous>, transform_indices = @transform_16, window_bounds = array<i64: 1, 32>}, {pipeline_mode = #tpu.pipeline_mode<synchronous>, transform_indices = @transform_17, window_bounds = array<i64: 32, 8>}, {pipeline_mode = #tpu.pipeline_mode<synchronous>, transform_indices = @transform_18, window_bounds = array<i64: 1, 8>}, {transform_indices = @transform_19, window_bounds = array<i64: 8, 8>}]} {
    %c0_i32 = arith.constant 0 : i32
    %0 = arith.cmpi eq, %arg1, %c0_i32 : i32
    %1 = arith.extui %0 : i1 to i32
    %c0_i32_0 = arith.constant 0 : i32
    %2 = arith.cmpi ne, %1, %c0_i32_0 : i32
    scf.if %2 {
      %c0_52 = arith.constant 0 : index
      %c0_53 = arith.constant 0 : index
      %99 = vector.load %arg3[%c0_52, %c0_53] : memref<8x8xf32, #tpu.memory_space<vmem>>, vector<8x8xf32>
      %c0_54 = arith.constant 0 : index
      %c0_55 = arith.constant 0 : index
      %100 = vector.load %arg22[%c0_54, %c0_55] : memref<8x8xf32, #tpu.memory_space<vmem>>, vector<8x8xf32>
      tpu.vector_store %arg22[%c0_54, %c0_55], %99 {strides = array<i32>} : memref<8x8xf32, #tpu.memory_space<vmem>>, vector<8x8xf32>,
    } else {
    }
    %c0 = arith.constant 0 : index
    %c0_1 = arith.constant 0 : index
    %3 = vector.load %arg22[%c0, %c0_1] : memref<8x8xf32, #tpu.memory_space<vmem>>, vector<8x8xf32>
    %c0_2 = arith.constant 0 : index
    %c0_3 = arith.constant 0 : index
    %4 = vector.load %arg4[%c0_2, %c0_3] : memref<8x16xf32, #tpu.memory_space<vmem>>, vector<8x16xf32>
    %5 = arith.index_cast %arg1 : i32 to index
    %c0_4 = arith.constant 0 : index
    %6 = memref.load %arg2[%5, %c0_4] : memref<5x8xf32, #tpu.memory_space<smem>>
    %7 = arith.index_cast %arg1 : i32 to index
    %c1 = arith.constant 1 : index
    %8 = memref.load %arg2[%7, %c1] : memref<5x8xf32, #tpu.memory_space<smem>>
    %9 = arith.index_cast %arg1 : i32 to index
    %c2 = arith.constant 2 : index
    %10 = memref.load %arg2[%9, %c2] : memref<5x8xf32, #tpu.memory_space<smem>>
    %11 = arith.index_cast %arg1 : i32 to index
    %c3 = arith.constant 3 : index
    %12 = memref.load %arg2[%11, %c3] : memref<5x8xf32, #tpu.memory_space<smem>>
    %13 = arith.index_cast %arg1 : i32 to index
    %c4 = arith.constant 4 : index
    %14 = memref.load %arg2[%13, %c4] : memref<5x8xf32, #tpu.memory_space<smem>>
    %15 = arith.index_cast %arg1 : i32 to index
    %c5 = arith.constant 5 : index
    %16 = memref.load %arg2[%15, %c5] : memref<5x8xf32, #tpu.memory_space<smem>>
    %17 = arith.index_cast %arg1 : i32 to index
    %c6 = arith.constant 6 : index
    %18 = memref.load %arg2[%17, %c6] : memref<5x8xf32, #tpu.memory_space<smem>>
    %c0_5 = arith.constant 0 : index
    %c0_6 = arith.constant 0 : index
    %19 = vector.load %arg6[%c0_5, %c0_6] : memref<1x16xf32, #tpu.memory_space<vmem>>, vector<1x16xf32>
    %20 = vector.broadcast %18 : f32 to vector<1x16xf32>
    %21 = arith.mulf %20, %19 : vector<1x16xf32>
    %c0_7 = arith.constant 0 : index
    %c0_8 = arith.constant 0 : index
    %22 = vector.load %arg7[%c0_7, %c0_8] : memref<1x16xf32, #tpu.memory_space<vmem>>, vector<1x16xf32>
    %23 = arith.addf %21, %22 : vector<1x16xf32>
    %24 = math.sin %23 : vector<1x16xf32>
    %c0_9 = arith.constant 0 : index
    %c0_10 = arith.constant 0 : index
    %25 = vector.load %arg8[%c0_9, %c0_10] : memref<16x32xf32, #tpu.memory_space<vmem>>, vector<16x32xf32>
    %cst = arith.constant dense<0.000000e+00> : vector<1x32xf32>
    %26 = tpu.matmul %24, %25, %cst {dimension_numbers = #tpu.dot_dimension_numbers<[1], [0], [0], [1], [0, 0, 1, 1], [], []>} : vector<1x16xf32>, vector<16x32xf32>, vector<1x32xf32> -> vector<1x32xf32>
    %c0_11 = arith.constant 0 : index
    %c0_12 = arith.constant 0 : index
    %27 = vector.load %arg9[%c0_11, %c0_12] : memref<1x32xf32, #tpu.memory_space<vmem>>, vector<1x32xf32>
    %28 = arith.addf %26, %27 : vector<1x32xf32>
    %29 = math.exp %28 : vector<1x32xf32>
    %30 = math.log1p %29 : vector<1x32xf32>
    %31 = math.tanh %30 : vector<1x32xf32>
    %32 = arith.mulf %28, %31 : vector<1x32xf32>
    %c0_13 = arith.constant 0 : index
    %c0_14 = arith.constant 0 : index
    %33 = vector.load %arg10[%c0_13, %c0_14] : memref<32x16xf32, #tpu.memory_space<vmem>>, vector<32x16xf32>
    %cst_15 = arith.constant dense<0.000000e+00> : vector<1x16xf32>
    %34 = tpu.matmul %32, %33, %cst_15 {dimension_numbers = #tpu.dot_dimension_numbers<[1], [0], [0], [1], [0, 0, 1, 1], [], []>} : vector<1x32xf32>, vector<32x16xf32>, vector<1x16xf32> -> vector<1x16xf32>
    %c0_16 = arith.constant 0 : index
    %c0_17 = arith.constant 0 : index
    %35 = vector.load %arg11[%c0_16, %c0_17] : memref<1x16xf32, #tpu.memory_space<vmem>>, vector<1x16xf32>
    %36 = arith.addf %34, %35 : vector<1x16xf32>
    %c0_18 = arith.constant 0 : index
    %c0_19 = arith.constant 0 : index
    %37 = vector.load %arg14[%c0_18, %c0_19] : memref<16x32xf32, #tpu.memory_space<vmem>>, vector<16x32xf32>
    %cst_20 = arith.constant dense<0.000000e+00> : vector<1x32xf32>
    %38 = tpu.matmul %36, %37, %cst_20 {dimension_numbers = #tpu.dot_dimension_numbers<[1], [0], [0], [1], [0, 0, 1, 1], [], []>} : vector<1x16xf32>, vector<16x32xf32>, vector<1x32xf32> -> vector<1x32xf32>
    %c0_21 = arith.constant 0 : index
    %c0_22 = arith.constant 0 : index
    %39 = vector.load %arg15[%c0_21, %c0_22] : memref<1x32xf32, #tpu.memory_space<vmem>>, vector<1x32xf32>
    %40 = arith.addf %38, %39 : vector<1x32xf32>
    %c0_23 = arith.constant 0 : index
    %c0_24 = arith.constant 0 : index
    %41 = vector.load %arg12[%c0_23, %c0_24] : memref<8x32xf32, #tpu.memory_space<vmem>>, vector<8x32xf32>
    %cst_25 = arith.constant dense<0.000000e+00> : vector<8x32xf32>
    %42 = tpu.matmul %3, %41, %cst_25 {dimension_numbers = #tpu.dot_dimension_numbers<[1], [0], [0], [1], [0, 0, 1, 1], [], []>} : vector<8x8xf32>, vector<8x32xf32>, vector<8x32xf32> -> vector<8x32xf32>
    %c0_26 = arith.constant 0 : index
    %c0_27 = arith.constant 0 : index
    %43 = vector.load %arg13[%c0_26, %c0_27] : memref<16x32xf32, #tpu.memory_space<vmem>>, vector<16x32xf32>
    %cst_28 = arith.constant dense<0.000000e+00> : vector<8x32xf32>
    %44 = tpu.matmul %4, %43, %cst_28 {dimension_numbers = #tpu.dot_dimension_numbers<[1], [0], [0], [1], [0, 0, 1, 1], [], []>} : vector<8x16xf32>, vector<16x32xf32>, vector<8x32xf32> -> vector<8x32xf32>
    %45 = arith.addf %42, %44 : vector<8x32xf32>
    %46 = vector.broadcast %40 : vector<1x32xf32> to vector<8x32xf32>
    %47 = arith.addf %45, %46 : vector<8x32xf32>
    %48 = math.exp %47 : vector<8x32xf32>
    %49 = math.log1p %48 : vector<8x32xf32>
    %50 = math.tanh %49 : vector<8x32xf32>
    %51 = arith.mulf %47, %50 : vector<8x32xf32>
    %c0_29 = arith.constant 0 : index
    %c0_30 = arith.constant 0 : index
    %52 = vector.load %arg16[%c0_29, %c0_30] : memref<32x32xf32, #tpu.memory_space<vmem>>, vector<32x32xf32>
    %cst_31 = arith.constant dense<0.000000e+00> : vector<8x32xf32>
    %53 = tpu.matmul %51, %52, %cst_31 {dimension_numbers = #tpu.dot_dimension_numbers<[1], [0], [0], [1], [0, 0, 1, 1], [], []>} : vector<8x32xf32>, vector<32x32xf32>, vector<8x32xf32> -> vector<8x32xf32>
    %c0_32 = arith.constant 0 : index
    %c0_33 = arith.constant 0 : index
    %54 = vector.load %arg17[%c0_32, %c0_33] : memref<1x32xf32, #tpu.memory_space<vmem>>, vector<1x32xf32>
    %55 = vector.broadcast %54 : vector<1x32xf32> to vector<8x32xf32>
    %56 = arith.addf %53, %55 : vector<8x32xf32>
    %57 = math.exp %56 : vector<8x32xf32>
    %58 = math.log1p %57 : vector<8x32xf32>
    %59 = math.tanh %58 : vector<8x32xf32>
    %60 = arith.mulf %56, %59 : vector<8x32xf32>
    %c0_34 = arith.constant 0 : index
    %c0_35 = arith.constant 0 : index
    %61 = vector.load %arg18[%c0_34, %c0_35] : memref<32x32xf32, #tpu.memory_space<vmem>>, vector<32x32xf32>
    %cst_36 = arith.constant dense<0.000000e+00> : vector<8x32xf32>
    %62 = tpu.matmul %60, %61, %cst_36 {dimension_numbers = #tpu.dot_dimension_numbers<[1], [0], [0], [1], [0, 0, 1, 1], [], []>} : vector<8x32xf32>, vector<32x32xf32>, vector<8x32xf32> -> vector<8x32xf32>
    %c0_37 = arith.constant 0 : index
    %c0_38 = arith.constant 0 : index
    %63 = vector.load %arg19[%c0_37, %c0_38] : memref<1x32xf32, #tpu.memory_space<vmem>>, vector<1x32xf32>
    %64 = vector.broadcast %63 : vector<1x32xf32> to vector<8x32xf32>
    %65 = arith.addf %62, %64 : vector<8x32xf32>
    %66 = math.exp %65 : vector<8x32xf32>
    %67 = math.log1p %66 : vector<8x32xf32>
    %68 = math.tanh %67 : vector<8x32xf32>
    %69 = arith.mulf %65, %68 : vector<8x32xf32>
    %c0_39 = arith.constant 0 : index
    %c0_40 = arith.constant 0 : index
    %70 = vector.load %arg20[%c0_39, %c0_40] : memref<32x8xf32, #tpu.memory_space<vmem>>, vector<32x8xf32>
    %cst_41 = arith.constant dense<0.000000e+00> : vector<8x8xf32>
    %71 = tpu.matmul %69, %70, %cst_41 {dimension_numbers = #tpu.dot_dimension_numbers<[1], [0], [0], [1], [0, 0, 1, 1], [], []>} : vector<8x32xf32>, vector<32x8xf32>, vector<8x8xf32> -> vector<8x8xf32>
    %c0_42 = arith.constant 0 : index
    %c0_43 = arith.constant 0 : index
    %72 = vector.load %arg21[%c0_42, %c0_43] : memref<1x8xf32, #tpu.memory_space<vmem>>, vector<1x8xf32>
    %73 = vector.broadcast %72 : vector<1x8xf32> to vector<8x8xf32>
    %74 = arith.addf %71, %73 : vector<8x8xf32>
    %75 = vector.broadcast %6 : f32 to vector<8x8xf32>
    %76 = arith.mulf %75, %3 : vector<8x8xf32>
    %77 = vector.broadcast %8 : f32 to vector<8x8xf32>
    %78 = arith.mulf %77, %74 : vector<8x8xf32>
    %79 = arith.subf %76, %78 : vector<8x8xf32>
    %cst_44 = arith.constant -1.000000e+00 : f32
    %cst_45 = arith.constant 1.000000e+00 : f32
    %80 = vector.broadcast %cst_44 : f32 to vector<8x8xf32>
    %81 = arith.maximumf %80, %79 : vector<8x8xf32>
    %82 = vector.broadcast %cst_45 : f32 to vector<8x8xf32>
    %83 = arith.minimumf %82, %81 : vector<8x8xf32>
    %84 = vector.broadcast %10 : f32 to vector<8x8xf32>
    %85 = arith.mulf %84, %3 : vector<8x8xf32>
    %86 = vector.broadcast %12 : f32 to vector<8x8xf32>
    %87 = arith.mulf %86, %83 : vector<8x8xf32>
    %88 = arith.addf %85, %87 : vector<8x8xf32>
    %89 = arith.mulf %14, %16 : f32
    %c0_46 = arith.constant 0 : index
    %c0_47 = arith.constant 0 : index
    %c0_48 = arith.constant 0 : index
    %90 = vector.load %arg5[%c0_46, %c0_47, %c0_48] : memref<1x8x8xf32, #tpu.memory_space<vmem>>, vector<1x8x8xf32>
    %91 = vector.shape_cast %90 : vector<1x8x8xf32> to vector<8x8xf32>
    %92 = vector.broadcast %89 : f32 to vector<8x8xf32>
    %93 = arith.mulf %92, %91 : vector<8x8xf32>
    %94 = arith.addf %88, %93 : vector<8x8xf32>
    %c0_49 = arith.constant 0 : index
    %c0_50 = arith.constant 0 : index
    %95 = vector.load %arg22[%c0_49, %c0_50] : memref<8x8xf32, #tpu.memory_space<vmem>>, vector<8x8xf32>
    tpu.vector_store %arg22[%c0_49, %c0_50], %94 {strides = array<i32>} : memref<8x8xf32, #tpu.memory_space<vmem>>, vector<8x8xf32>,
    %c4_i32 = arith.constant 4 : i32
    %96 = arith.cmpi eq, %arg1, %c4_i32 : i32
    %97 = arith.extui %96 : i1 to i32
    %c0_i32_51 = arith.constant 0 : i32
    %98 = arith.cmpi ne, %97, %c0_i32_51 : i32
    scf.if %98 {
      %cst_52 = arith.constant -1.000000e+00 : f32
      %cst_53 = arith.constant 1.000000e+00 : f32
      %99 = vector.broadcast %cst_52 : f32 to vector<8x8xf32>
      %100 = arith.maximumf %99, %94 : vector<8x8xf32>
      %101 = vector.broadcast %cst_53 : f32 to vector<8x8xf32>
      %102 = arith.minimumf %101, %100 : vector<8x8xf32>
      %c0_54 = arith.constant 0 : index
      %c0_55 = arith.constant 0 : index
      %103 = vector.load %arg22[%c0_54, %c0_55] : memref<8x8xf32, #tpu.memory_space<vmem>>, vector<8x8xf32>
      tpu.vector_store %arg22[%c0_54, %c0_55], %102 {strides = array<i32>} : memref<8x8xf32, #tpu.memory_space<vmem>>, vector<8x8xf32>,
    } else {
    }
    return
  }
  func.func @transform_0(%arg0: i32, %arg1: i32, %arg2: memref<5x8xf32, #tpu.memory_space<smem>>) -> (i32, i32) {
    %c0_i32 = arith.constant 0 : i32
    %c0_i32_0 = arith.constant 0 : i32
    return %arg0, %c0_i32 : i32, i32
  }
  func.func @transform_1(%arg0: i32, %arg1: i32, %arg2: memref<5x8xf32, #tpu.memory_space<smem>>) -> (i32, i32) {
    %c0_i32 = arith.constant 0 : i32
    %c0_i32_0 = arith.constant 0 : i32
    return %arg0, %c0_i32 : i32, i32
  }
  func.func @transform_2(%arg0: i32, %arg1: i32, %arg2: memref<5x8xf32, #tpu.memory_space<smem>>) -> (i32, i32, i32) {
    %c0_i32 = arith.constant 0 : i32
    %c0_i32_0 = arith.constant 0 : i32
    return %arg1, %arg0, %c0_i32 : i32, i32, i32
  }
  func.func @transform_3(%arg0: i32, %arg1: i32, %arg2: memref<5x8xf32, #tpu.memory_space<smem>>) -> (i32, i32) {
    %c0_i32 = arith.constant 0 : i32
    %c0_i32_0 = arith.constant 0 : i32
    %c0_i32_1 = arith.constant 0 : i32
    return %c0_i32, %c0_i32_0 : i32, i32
  }
  func.func @transform_4(%arg0: i32, %arg1: i32, %arg2: memref<5x8xf32, #tpu.memory_space<smem>>) -> (i32, i32) {
    %c0_i32 = arith.constant 0 : i32
    %c0_i32_0 = arith.constant 0 : i32
    %c0_i32_1 = arith.constant 0 : i32
    return %c0_i32, %c0_i32_0 : i32, i32
  }
  func.func @transform_5(%arg0: i32, %arg1: i32, %arg2: memref<5x8xf32, #tpu.memory_space<smem>>) -> (i32, i32) {
    %c0_i32 = arith.constant 0 : i32
    %c0_i32_0 = arith.constant 0 : i32
    %c0_i32_1 = arith.constant 0 : i32
    return %c0_i32, %c0_i32_0 : i32, i32
  }
  func.func @transform_6(%arg0: i32, %arg1: i32, %arg2: memref<5x8xf32, #tpu.memory_space<smem>>) -> (i32, i32) {
    %c0_i32 = arith.constant 0 : i32
    %c0_i32_0 = arith.constant 0 : i32
    %c0_i32_1 = arith.constant 0 : i32
    return %c0_i32, %c0_i32_0 : i32, i32
  }
  func.func @transform_7(%arg0: i32, %arg1: i32, %arg2: memref<5x8xf32, #tpu.memory_space<smem>>) -> (i32, i32) {
    %c0_i32 = arith.constant 0 : i32
    %c0_i32_0 = arith.constant 0 : i32
    %c0_i32_1 = arith.constant 0 : i32
    return %c0_i32, %c0_i32_0 : i32, i32
  }
  func.func @transform_8(%arg0: i32, %arg1: i32, %arg2: memref<5x8xf32, #tpu.memory_space<smem>>) -> (i32, i32) {
    %c0_i32 = arith.constant 0 : i32
    %c0_i32_0 = arith.constant 0 : i32
    %c0_i32_1 = arith.constant 0 : i32
    return %c0_i32, %c0_i32_0 : i32, i32
  }
  func.func @transform_9(%arg0: i32, %arg1: i32, %arg2: memref<5x8xf32, #tpu.memory_space<smem>>) -> (i32, i32) {
    %c0_i32 = arith.constant 0 : i32
    %c0_i32_0 = arith.constant 0 : i32
    %c0_i32_1 = arith.constant 0 : i32
    return %c0_i32, %c0_i32_0 : i32, i32
  }
  func.func @transform_10(%arg0: i32, %arg1: i32, %arg2: memref<5x8xf32, #tpu.memory_space<smem>>) -> (i32, i32) {
    %c0_i32 = arith.constant 0 : i32
    %c0_i32_0 = arith.constant 0 : i32
    %c0_i32_1 = arith.constant 0 : i32
    return %c0_i32, %c0_i32_0 : i32, i32
  }
  func.func @transform_11(%arg0: i32, %arg1: i32, %arg2: memref<5x8xf32, #tpu.memory_space<smem>>) -> (i32, i32) {
    %c0_i32 = arith.constant 0 : i32
    %c0_i32_0 = arith.constant 0 : i32
    %c0_i32_1 = arith.constant 0 : i32
    return %c0_i32, %c0_i32_0 : i32, i32
  }
  func.func @transform_12(%arg0: i32, %arg1: i32, %arg2: memref<5x8xf32, #tpu.memory_space<smem>>) -> (i32, i32) {
    %c0_i32 = arith.constant 0 : i32
    %c0_i32_0 = arith.constant 0 : i32
    %c0_i32_1 = arith.constant 0 : i32
    return %c0_i32, %c0_i32_0 : i32, i32
  }
  func.func @transform_13(%arg0: i32, %arg1: i32, %arg2: memref<5x8xf32, #tpu.memory_space<smem>>) -> (i32, i32) {
    %c0_i32 = arith.constant 0 : i32
    %c0_i32_0 = arith.constant 0 : i32
    %c0_i32_1 = arith.constant 0 : i32
    return %c0_i32, %c0_i32_0 : i32, i32
  }
  func.func @transform_14(%arg0: i32, %arg1: i32, %arg2: memref<5x8xf32, #tpu.memory_space<smem>>) -> (i32, i32) {
    %c0_i32 = arith.constant 0 : i32
    %c0_i32_0 = arith.constant 0 : i32
    %c0_i32_1 = arith.constant 0 : i32
    return %c0_i32, %c0_i32_0 : i32, i32
  }
  func.func @transform_15(%arg0: i32, %arg1: i32, %arg2: memref<5x8xf32, #tpu.memory_space<smem>>) -> (i32, i32) {
    %c0_i32 = arith.constant 0 : i32
    %c0_i32_0 = arith.constant 0 : i32
    %c0_i32_1 = arith.constant 0 : i32
    return %c0_i32, %c0_i32_0 : i32, i32
  }
  func.func @transform_16(%arg0: i32, %arg1: i32, %arg2: memref<5x8xf32, #tpu.memory_space<smem>>) -> (i32, i32) {
    %c0_i32 = arith.constant 0 : i32
    %c0_i32_0 = arith.constant 0 : i32
    %c0_i32_1 = arith.constant 0 : i32
    return %c0_i32, %c0_i32_0 : i32, i32
  }
  func.func @transform_17(%arg0: i32, %arg1: i32, %arg2: memref<5x8xf32, #tpu.memory_space<smem>>) -> (i32, i32) {
    %c0_i32 = arith.constant 0 : i32
    %c0_i32_0 = arith.constant 0 : i32
    %c0_i32_1 = arith.constant 0 : i32
    return %c0_i32, %c0_i32_0 : i32, i32
  }
  func.func @transform_18(%arg0: i32, %arg1: i32, %arg2: memref<5x8xf32, #tpu.memory_space<smem>>) -> (i32, i32) {
    %c0_i32 = arith.constant 0 : i32
    %c0_i32_0 = arith.constant 0 : i32
    %c0_i32_1 = arith.constant 0 : i32
    return %c0_i32, %c0_i32_0 : i32, i32
  }
  func.func @transform_19(%arg0: i32, %arg1: i32, %arg2: memref<5x8xf32, #tpu.memory_space<smem>>) -> (i32, i32) {
    %c0_i32 = arith.constant 0 : i32
    %c0_i32_0 = arith.constant 0 : i32
    return %arg0, %c0_i32 : i32, i32
  }
}

</mosaic_0001>

<llo_original>
// kernel: tpu_custom_call.1
$region0: #{tpu_custom_call.1}
  #allocation0 [shape = 'u32[]', space=smem, size = 0x4, offset = 0x4, fixed_abs, tag = 'smem constant byte address 0x4 - core index']
  #allocation1 [shape = 'u32[144,128]{1,0:T(1,128)}', space=vmem, size = 0x12000, scoped, tag = 'internal scratch']
  #allocation2 [shape = 's32[1]{0}', space=sflag, size = 0x4, scoped, tag = 'scoped memory for tpu_custom_call.1']
  #allocation3 [shape = 'u8[4096]{0}', space=smem, size = 0x1000, scoped, tag = 'prefetched SMEM operand 0']
  %s0 = inlined_call_operand.hbm [shape: f32[5,8], index: 0, kind: input, shape index: {}]
  %s1 = inlined_call_operand.hbm [shape: f32[8,8], index: 1, kind: input, shape index: {}]
  %s2 = inlined_call_operand.hbm [shape: f32[8,16], index: 2, kind: input, shape index: {}]
  %s3 = inlined_call_operand.vmem [shape: f32[5,8,8], index: 3, kind: input, shape index: {}]
  %s4 = inlined_call_operand.vmem [shape: f32[1,16], index: 4, kind: input, shape index: {}]
  %s5 = inlined_call_operand.hbm [shape: f32[1,16], index: 5, kind: input, shape index: {}]
  %s6 = inlined_call_operand.hbm [shape: f32[16,32], index: 6, kind: input, shape index: {}]
  %s7 = inlined_call_operand.hbm [shape: f32[1,32], index: 7, kind: input, shape index: {}]
  %s8 = inlined_call_operand.vmem [shape: f32[32,16], index: 8, kind: input, shape index: {}]
  %s9 = inlined_call_operand.hbm [shape: f32[1,16], index: 9, kind: input, shape index: {}]
  %s10 = inlined_call_operand.hbm [shape: f32[8,32], index: 10, kind: input, shape index: {}]
  %s11 = inlined_call_operand.vmem [shape: f32[16,32], index: 11, kind: input, shape index: {}]
  %s12 = inlined_call_operand.hbm [shape: f32[16,32], index: 12, kind: input, shape index: {}]
  %s13 = inlined_call_operand.vmem [shape: f32[1,32], index: 13, kind: input, shape index: {}]
  %s14 = inlined_call_operand.vmem [shape: f32[32,32], index: 14, kind: input, shape index: {}]
  %s15 = inlined_call_operand.vmem [shape: f32[1,32], index: 15, kind: input, shape index: {}]
  %s16 = inlined_call_operand.vmem [shape: f32[32,32], index: 16, kind: input, shape index: {}]
  %s17 = inlined_call_operand.vmem [shape: f32[1,32], index: 17, kind: input, shape index: {}]
  %s18 = inlined_call_operand.vmem [shape: f32[32,8], index: 18, kind: input, shape index: {}]
  %s19 = inlined_call_operand.vmem [shape: f32[1,8], index: 19, kind: input, shape index: {}]
  %s20 = inlined_call_operand.hbm [shape: f32[8,8], index: 20, kind: output, shape index: {}]
  %s21 = sld [smem:[#allocation0]]
  $region149: #{tpu_custom_call.1} parent=0
    _
  %s23 = ssub.s32 1, %s21
  %s24 = scalar_select 0, %s23, %s21
  %26 = dma.hbm_to_smem %s0, 128, [#allocation3], [#allocation2]
  %27 = dma.done [#allocation2], 128
  %28 = sfence
  $region1: #{tpu_custom_call.1} parent=0
    #allocation4 [shape = 'u8[4096]{0}', space=vmem, size = 0x1000, scoped, tag = 'input window, operand 1, single buffered']
    #allocation5 [shape = 's32[2]{0}', space=sflag, size = 0x8, scoped, tag = 'scoped memory for tpu_custom_call.1']
    #allocation6 [shape = 's32[2]{0}', space=sflag, size = 0x8, scoped, tag = 'scoped memory for tpu_custom_call.1']
    #allocation7 [shape = 'u8[4096]{0}', space=vmem, size = 0x1000, scoped, tag = 'input window, operand 2, single buffered']
    #allocation8 [shape = 's32[1]{0}', space=sflag, size = 0x4, scoped, tag = 'scoped memory for tpu_custom_call.1']
    #allocation9 [shape = 'u8[512]{0}', space=vmem, size = 0x400, scoped, tag = 'input window, operand 5, single buffered']
    #allocation10 [shape = 'u8[8192]{0}', space=vmem, size = 0x2000, scoped, tag = 'input window, operand 6, single buffered']
    #allocation11 [shape = 's32[1]{0}', space=sflag, size = 0x4, scoped, tag = 'scoped memory for tpu_custom_call.1']
    #allocation12 [shape = 'u8[512]{0}', space=vmem, size = 0x400, scoped, tag = 'input window, operand 7, single buffered']
    #allocation13 [shape = 'u8[512]{0}', space=vmem, size = 0x400, scoped, tag = 'input window, operand 9, single buffered']
    #allocation14 [shape = 's32[1]{0}', space=sflag, size = 0x4, scoped, tag = 'scoped memory for tpu_custom_call.1']
    #allocation15 [shape = 'u8[4096]{0}', space=vmem, size = 0x1000, scoped, tag = 'input window, operand 10, single buffered']
    #allocation16 [shape = 'u8[8192]{0}', space=vmem, size = 0x2000, scoped, tag = 'input window, operand 12, single buffered']
    #allocation17 [shape = 's32[1]{0}', space=sflag, size = 0x4, scoped, tag = 'scoped memory for tpu_custom_call.1']
    #allocation18 [shape = 'u8[4096]{0}', space=vmem, size = 0x1000, scoped, tag = 'output window, operand 0, single buffered']
    %29 = vsyncpa [#allocation5], 0
    %30 = vsyncpa [#allocation8], 0
    %31 = vsyncpa [#allocation11], 0
    %32 = vsyncpa [#allocation14], 0
    %33 = vsyncpa [#allocation17], 0
    %34 = vsyncpa [#allocation6], 0
    loop: start=0, step=1, limit=7
    $region2: #{tpu_custom_call.1} parent=1 // loop_pre_header
      _
    $region3: #{tpu_custom_call.1} parent=1 // loop_header
      %s36 = sphi 0, %s40
      %p37 = scmp.ge.s32.totalorder %s36, 7
      %s43 = sphi 0, %s55
      %s44 = sphi 0, %s51
      %s45 = sphi 0, %s43
      %s46 = sphi 0, %s44
      %s47 = sphi 0, %s45
      %s48 = sphi 0, %s46
      %s58 = sphi 0, %s60
      %s61 = sphi 0, %s58
      %s62 = sphi 0, %s61
      %s78 = sphi 0, %s62
      %s84 = sphi 0, %s86
      %s87 = sphi 0, %s84
      %s88 = sphi 0, %s87
      %s104 = sphi 0, %s88
      %s112 = sphi 0, %s114
      %s115 = sphi 0, %s112
      %s116 = sphi 0, %s115
      %s132 = sphi 0, %s116
      %s136 = sphi 0, %s136
      %s138 = sphi 0, %s136
      %s139 = sphi 0, %s138
      %s153 = sphi 0, %s139
      %s157 = sphi 0, %s157
      %s159 = sphi 0, %s157
      %s160 = sphi 0, %s159
      %s174 = sphi 0, %s160
      %s178 = sphi 0, %s178
      %s180 = sphi 0, %s178
      %s181 = sphi 0, %s180
      %s195 = sphi 0, %s181
      %s199 = sphi 0, %s199
      %s201 = sphi 0, %s199
      %s202 = sphi 0, %s201
      %s216 = sphi 0, %s202
      %s220 = sphi 0, %s220
      %s222 = sphi 0, %s220
      %s223 = sphi 0, %s222
      %s237 = sphi 0, %s223
      %s241 = sphi 0, %s241
      %s243 = sphi 0, %s241
      %s244 = sphi 0, %s243
      %s258 = sphi 0, %s244
      %s262 = sphi 0, %s262
      %s264 = sphi 0, %s262
      %s265 = sphi 0, %s264
      %s279 = sphi 0, %s265
      %s283 = sphi 0, %s283
      %s285 = sphi 0, %s283
      %s286 = sphi 0, %s285
      %s300 = sphi 0, %s286
      %s304 = sphi 0, %s304
      %s306 = sphi 0, %s304
      %s307 = sphi 0, %s306
      %s321 = sphi 0, %s307
      %s325 = sphi 0, %s325
      %s327 = sphi 0, %s325
      %s328 = sphi 0, %s327
      %s342 = sphi 0, %s328
      %s346 = sphi 0, %s346
      %s348 = sphi 0, %s346
      %s349 = sphi 0, %s348
      %s363 = sphi 0, %s349
      %s367 = sphi 0, %s367
      %s369 = sphi 0, %s367
      %s370 = sphi 0, %s369
      %s384 = sphi 0, %s370
      %s388 = sphi 0, %s388
      %s390 = sphi 0, %s388
      %s391 = sphi 0, %s390
      %s405 = sphi 0, %s391
      %s409 = sphi 0, %s409
      %s411 = sphi 0, %s409
      %s412 = sphi 0, %s411
      %s426 = sphi 0, %s412
      %s430 = sphi 0, %s430
      %s432 = sphi 0, %s430
      %s433 = sphi 0, %s432
      %s447 = sphi 0, %s433
      %s451 = sphi 0, %s451
      %s453 = sphi 0, %s451
      %s454 = sphi 0, %s453
      %s468 = sphi 0, %s454
      %s474 = sphi 0, %s476
      %s477 = sphi 0, %s474
      %s478 = sphi 0, %s477
      %s494 = sphi 0, %s478
    $region4: #{tpu_custom_call.1} parent=1 // loop_header_branch
      %39 = sbr.rel (%p37) target = $region8
    $region5: #{tpu_custom_call.1} parent=1 // loop_body
      %s41 = ssub.s32 %s36, 1
      %s42 = ssub.s32 %s36, 2
      %s49 = sadd.s32 1, %s44
      %p50 = scmp.ge.s32.totalorder %s49, 5
      %s51 = scalar_select %p50, 0, %s49
      %s52 = sadd.s32 1, %s43
      %s53 = scalar_select %p50, %s52, %s43
      %p54 = scmp.ge.s32.totalorder %s53, 1
      %s55 = scalar_select %p54, 0, %s53
      %s56 = ssub.s32 %s43, %s55
      %p57 = scmp.eq.s32.totalorder %s56, 0
      %s59 = sadd.s32 %s58, 1
      %s60 = scalar_select %p57, %s58, %s59
      %p63 = pneg %p57
      %p64 = scmp.eq.s32.totalorder %s36, 4
      %p65 = por %p63, %p64
      %p66 = scmp.ne.s32.totalorder %s58, %s61
      %p67 = scmp.eq.s32.totalorder %s36, 0
      %p68 = por %p66, %p67
      %p69 = scmp.ne.s32.totalorder %s58, %s61
      %p70 = scmp.eq.s32.totalorder %s41, 4
      %p71 = por %p69, %p70
      %p72 = scmp.ne.s32.totalorder %s61, %s62
      %p73 = scmp.eq.s32.totalorder %s41, 0
      %p74 = por %p72, %p73
      %p75 = scmp.ne.s32.totalorder %s61, %s62
      %p76 = scmp.eq.s32.totalorder %s42, 4
      %p77 = por %p75, %p76
      %p79 = scmp.ne.s32.totalorder %s62, %s78
      %p80 = scmp.eq.s32.totalorder %s42, 0
      %p81 = por %p79, %p80
      %s82 = ssub.s32 %s43, %s55
      %p83 = scmp.eq.s32.totalorder %s82, 0
      %s85 = sadd.s32 %s84, 1
      %s86 = scalar_select %p83, %s84, %s85
      %p89 = pneg %p83
      %p90 = scmp.eq.s32.totalorder %s36, 4
      %p91 = por %p89, %p90
      %p92 = scmp.ne.s32.totalorder %s84, %s87
      %p93 = scmp.eq.s32.totalorder %s36, 0
      %p94 = por %p92, %p93
      %p95 = scmp.ne.s32.totalorder %s84, %s87
      %p96 = scmp.eq.s32.totalorder %s41, 4
      %p97 = por %p95, %p96
      %p98 = scmp.ne.s32.totalorder %s87, %s88
      %p99 = scmp.eq.s32.totalorder %s41, 0
      %p100 = por %p98, %p99
      %p101 = scmp.ne.s32.totalorder %s87, %s88
      %p102 = scmp.eq.s32.totalorder %s42, 4
      %p103 = por %p101, %p102
      %p105 = scmp.ne.s32.totalorder %s88, %s104
      %p106 = scmp.eq.s32.totalorder %s42, 0
      %p107 = por %p105, %p106
      %s108 = ssub.s32 %s44, %s51
      %s109 = ssub.s32 %s43, %s55
      %s110 = sor.u32 %s108, %s109
      %p111 = scmp.eq.s32.totalorder %s110, 0
      %s113 = sadd.s32 %s112, 1
      %s114 = scalar_select %p111, %s112, %s113
      %p117 = pneg %p111
      %p118 = scmp.eq.s32.totalorder %s36, 4
      %p119 = por %p117, %p118
      %p120 = scmp.ne.s32.totalorder %s112, %s115
      %p121 = scmp.eq.s32.totalorder %s36, 0
      %p122 = por %p120, %p121
      %p123 = scmp.ne.s32.totalorder %s112, %s115
      %p124 = scmp.eq.s32.totalorder %s41, 4
      %p125 = por %p123, %p124
      %p126 = scmp.ne.s32.totalorder %s115, %s116
      %p127 = scmp.eq.s32.totalorder %s41, 0
      %p128 = por %p126, %p127
      %p129 = scmp.ne.s32.totalorder %s115, %s116
      %p130 = scmp.eq.s32.totalorder %s42, 4
      %p131 = por %p129, %p130
      %p133 = scmp.ne.s32.totalorder %s116, %s132
      %p134 = scmp.eq.s32.totalorder %s42, 0
      %p135 = por %p133, %p134
      %s137 = sadd.s32 %s136, 1
      %p140 = scmp.eq.s32.totalorder %s36, 4
      %p141 = scmp.ne.s32.totalorder %s136, %s138
      %p142 = scmp.eq.s32.totalorder %s36, 0
      %p143 = por %p141, %p142
      %p144 = scmp.ne.s32.totalorder %s136, %s138
      %p145 = scmp.eq.s32.totalorder %s41, 4
      %p146 = por %p144, %p145
      %p147 = scmp.ne.s32.totalorder %s138, %s139
      %p148 = scmp.eq.s32.totalorder %s41, 0
      %p149 = por %p147, %p148
      %p150 = scmp.ne.s32.totalorder %s138, %s139
      %p151 = scmp.eq.s32.totalorder %s42, 4
      %p152 = por %p150, %p151
      %p154 = scmp.ne.s32.totalorder %s139, %s153
      %p155 = scmp.eq.s32.totalorder %s42, 0
      %p156 = por %p154, %p155
      %s158 = sadd.s32 %s157, 1
      %p161 = scmp.eq.s32.totalorder %s36, 4
      %p162 = scmp.ne.s32.totalorder %s157, %s159
      %p163 = scmp.eq.s32.totalorder %s36, 0
      %p164 = por %p162, %p163
      %p165 = scmp.ne.s32.totalorder %s157, %s159
      %p166 = scmp.eq.s32.totalorder %s41, 4
      %p167 = por %p165, %p166
      %p168 = scmp.ne.s32.totalorder %s159, %s160
      %p169 = scmp.eq.s32.totalorder %s41, 0
      %p170 = por %p168, %p169
      %p171 = scmp.ne.s32.totalorder %s159, %s160
      %p172 = scmp.eq.s32.totalorder %s42, 4
      %p173 = por %p171, %p172
      %p175 = scmp.ne.s32.totalorder %s160, %s174
      %p176 = scmp.eq.s32.totalorder %s42, 0
      %p177 = por %p175, %p176
      %s179 = sadd.s32 %s178, 1
      %p182 = scmp.eq.s32.totalorder %s36, 4
      %p183 = scmp.ne.s32.totalorder %s178, %s180
      %p184 = scmp.eq.s32.totalorder %s36, 0
      %p185 = por %p183, %p184
      %p186 = scmp.ne.s32.totalorder %s178, %s180
      %p187 = scmp.eq.s32.totalorder %s41, 4
      %p188 = por %p186, %p187
      %p189 = scmp.ne.s32.totalorder %s180, %s181
      %p190 = scmp.eq.s32.totalorder %s41, 0
      %p191 = por %p189, %p190
      %p192 = scmp.ne.s32.totalorder %s180, %s181
      %p193 = scmp.eq.s32.totalorder %s42, 4
      %p194 = por %p192, %p193
      %p196 = scmp.ne.s32.totalorder %s181, %s195
      %p197 = scmp.eq.s32.totalorder %s42, 0
      %p198 = por %p196, %p197
      %s200 = sadd.s32 %s199, 1
      %p203 = scmp.eq.s32.totalorder %s36, 4
      %p204 = scmp.ne.s32.totalorder %s199, %s201
      %p205 = scmp.eq.s32.totalorder %s36, 0
      %p206 = por %p204, %p205
      %p207 = scmp.ne.s32.totalorder %s199, %s201
      %p208 = scmp.eq.s32.totalorder %s41, 4
      %p209 = por %p207, %p208
      %p210 = scmp.ne.s32.totalorder %s201, %s202
      %p211 = scmp.eq.s32.totalorder %s41, 0
      %p212 = por %p210, %p211
      %p213 = scmp.ne.s32.totalorder %s201, %s202
      %p214 = scmp.eq.s32.totalorder %s42, 4
      %p215 = por %p213, %p214
      %p217 = scmp.ne.s32.totalorder %s202, %s216
      %p218 = scmp.eq.s32.totalorder %s42, 0
      %p219 = por %p217, %p218
      %s221 = sadd.s32 %s220, 1
      %p224 = scmp.eq.s32.totalorder %s36, 4
      %p225 = scmp.ne.s32.totalorder %s220, %s222
      %p226 = scmp.eq.s32.totalorder %s36, 0
      %p227 = por %p225, %p226
      %p228 = scmp.ne.s32.totalorder %s220, %s222
      %p229 = scmp.eq.s32.totalorder %s41, 4
      %p230 = por %p228, %p229
      %p231 = scmp.ne.s32.totalorder %s222, %s223
      %p232 = scmp.eq.s32.totalorder %s41, 0
      %p233 = por %p231, %p232
      %p234 = scmp.ne.s32.totalorder %s222, %s223
      %p235 = scmp.eq.s32.totalorder %s42, 4
      %p236 = por %p234, %p235
      %p238 = scmp.ne.s32.totalorder %s223, %s237
      %p239 = scmp.eq.s32.totalorder %s42, 0
      %p240 = por %p238, %p239
      %s242 = sadd.s32 %s241, 1
      %p245 = scmp.eq.s32.totalorder %s36, 4
      %p246 = scmp.ne.s32.totalorder %s241, %s243
      %p247 = scmp.eq.s32.totalorder %s36, 0
      %p248 = por %p246, %p247
      %p249 = scmp.ne.s32.totalorder %s241, %s243
      %p250 = scmp.eq.s32.totalorder %s41, 4
      %p251 = por %p249, %p250
      %p252 = scmp.ne.s32.totalorder %s243, %s244
      %p253 = scmp.eq.s32.totalorder %s41, 0
      %p254 = por %p252, %p253
      %p255 = scmp.ne.s32.totalorder %s243, %s244
      %p256 = scmp.eq.s32.totalorder %s42, 4
      %p257 = por %p255, %p256
      %p259 = scmp.ne.s32.totalorder %s244, %s258
      %p260 = scmp.eq.s32.totalorder %s42, 0
      %p261 = por %p259, %p260
      %s263 = sadd.s32 %s262, 1
      %p266 = scmp.eq.s32.totalorder %s36, 4
      %p267 = scmp.ne.s32.totalorder %s262, %s264
      %p268 = scmp.eq.s32.totalorder %s36, 0
      %p269 = por %p267, %p268
      %p270 = scmp.ne.s32.totalorder %s262, %s264
      %p271 = scmp.eq.s32.totalorder %s41, 4
      %p272 = por %p270, %p271
      %p273 = scmp.ne.s32.totalorder %s264, %s265
      %p274 = scmp.eq.s32.totalorder %s41, 0
      %p275 = por %p273, %p274
      %p276 = scmp.ne.s32.totalorder %s264, %s265
      %p277 = scmp.eq.s32.totalorder %s42, 4
      %p278 = por %p276, %p277
      %p280 = scmp.ne.s32.totalorder %s265, %s279
      %p281 = scmp.eq.s32.totalorder %s42, 0
      %p282 = por %p280, %p281
      %s284 = sadd.s32 %s283, 1
      %p287 = scmp.eq.s32.totalorder %s36, 4
      %p288 = scmp.ne.s32.totalorder %s283, %s285
      %p289 = scmp.eq.s32.totalorder %s36, 0
      %p290 = por %p288, %p289
      %p291 = scmp.ne.s32.totalorder %s283, %s285
      %p292 = scmp.eq.s32.totalorder %s41, 4
      %p293 = por %p291, %p292
      %p294 = scmp.ne.s32.totalorder %s285, %s286
      %p295 = scmp.eq.s32.totalorder %s41, 0
      %p296 = por %p294, %p295
      %p297 = scmp.ne.s32.totalorder %s285, %s286
      %p298 = scmp.eq.s32.totalorder %s42, 4
      %p299 = por %p297, %p298
      %p301 = scmp.ne.s32.totalorder %s286, %s300
      %p302 = scmp.eq.s32.totalorder %s42, 0
      %p303 = por %p301, %p302
      %s305 = sadd.s32 %s304, 1
      %p308 = scmp.eq.s32.totalorder %s36, 4
      %p309 = scmp.ne.s32.totalorder %s304, %s306
      %p310 = scmp.eq.s32.totalorder %s36, 0
      %p311 = por %p309, %p310
      %p312 = scmp.ne.s32.totalorder %s304, %s306
      %p313 = scmp.eq.s32.totalorder %s41, 4
      %p314 = por %p312, %p313
      %p315 = scmp.ne.s32.totalorder %s306, %s307
      %p316 = scmp.eq.s32.totalorder %s41, 0
      %p317 = por %p315, %p316
      %p318 = scmp.ne.s32.totalorder %s306, %s307
      %p319 = scmp.eq.s32.totalorder %s42, 4
      %p320 = por %p318, %p319
      %p322 = scmp.ne.s32.totalorder %s307, %s321
      %p323 = scmp.eq.s32.totalorder %s42, 0
      %p324 = por %p322, %p323
      %s326 = sadd.s32 %s325, 1
      %p329 = scmp.eq.s32.totalorder %s36, 4
      %p330 = scmp.ne.s32.totalorder %s325, %s327
      %p331 = scmp.eq.s32.totalorder %s36, 0
      %p332 = por %p330, %p331
      %p333 = scmp.ne.s32.totalorder %s325, %s327
      %p334 = scmp.eq.s32.totalorder %s41, 4
      %p335 = por %p333, %p334
      %p336 = scmp.ne.s32.totalorder %s327, %s328
      %p337 = scmp.eq.s32.totalorder %s41, 0
      %p338 = por %p336, %p337
      %p339 = scmp.ne.s32.totalorder %s327, %s328
      %p340 = scmp.eq.s32.totalorder %s42, 4
      %p341 = por %p339, %p340
      %p343 = scmp.ne.s32.totalorder %s328, %s342
      %p344 = scmp.eq.s32.totalorder %s42, 0
      %p345 = por %p343, %p344
      %s347 = sadd.s32 %s346, 1
      %p350 = scmp.eq.s32.totalorder %s36, 4
      %p351 = scmp.ne.s32.totalorder %s346, %s348
      %p352 = scmp.eq.s32.totalorder %s36, 0
      %p353 = por %p351, %p352
      %p354 = scmp.ne.s32.totalorder %s346, %s348
      %p355 = scmp.eq.s32.totalorder %s41, 4
      %p356 = por %p354, %p355
      %p357 = scmp.ne.s32.totalorder %s348, %s349
      %p358 = scmp.eq.s32.totalorder %s41, 0
      %p359 = por %p357, %p358
      %p360 = scmp.ne.s32.totalorder %s348, %s349
      %p361 = scmp.eq.s32.totalorder %s42, 4
      %p362 = por %p360, %p361
      %p364 = scmp.ne.s32.totalorder %s349, %s363
      %p365 = scmp.eq.s32.totalorder %s42, 0
      %p366 = por %p364, %p365
      %s368 = sadd.s32 %s367, 1
      %p371 = scmp.eq.s32.totalorder %s36, 4
      %p372 = scmp.ne.s32.totalorder %s367, %s369
      %p373 = scmp.eq.s32.totalorder %s36, 0
      %p374 = por %p372, %p373
      %p375 = scmp.ne.s32.totalorder %s367, %s369
      %p376 = scmp.eq.s32.totalorder %s41, 4
      %p377 = por %p375, %p376
      %p378 = scmp.ne.s32.totalorder %s369, %s370
      %p379 = scmp.eq.s32.totalorder %s41, 0
      %p380 = por %p378, %p379
      %p381 = scmp.ne.s32.totalorder %s369, %s370
      %p382 = scmp.eq.s32.totalorder %s42, 4
      %p383 = por %p381, %p382
      %p385 = scmp.ne.s32.totalorder %s370, %s384
      %p386 = scmp.eq.s32.totalorder %s42, 0
      %p387 = por %p385, %p386
      %s389 = sadd.s32 %s388, 1
      %p392 = scmp.eq.s32.totalorder %s36, 4
      %p393 = scmp.ne.s32.totalorder %s388, %s390
      %p394 = scmp.eq.s32.totalorder %s36, 0
      %p395 = por %p393, %p394
      %p396 = scmp.ne.s32.totalorder %s388, %s390
      %p397 = scmp.eq.s32.totalorder %s41, 4
      %p398 = por %p396, %p397
      %p399 = scmp.ne.s32.totalorder %s390, %s391
      %p400 = scmp.eq.s32.totalorder %s41, 0
      %p401 = por %p399, %p400
      %p402 = scmp.ne.s32.totalorder %s390, %s391
      %p403 = scmp.eq.s32.totalorder %s42, 4
      %p404 = por %p402, %p403
      %p406 = scmp.ne.s32.totalorder %s391, %s405
      %p407 = scmp.eq.s32.totalorder %s42, 0
      %p408 = por %p406, %p407
      %s410 = sadd.s32 %s409, 1
      %p413 = scmp.eq.s32.totalorder %s36, 4
      %p414 = scmp.ne.s32.totalorder %s409, %s411
      %p415 = scmp.eq.s32.totalorder %s36, 0
      %p416 = por %p414, %p415
      %p417 = scmp.ne.s32.totalorder %s409, %s411
      %p418 = scmp.eq.s32.totalorder %s41, 4
      %p419 = por %p417, %p418
      %p420 = scmp.ne.s32.totalorder %s411, %s412
      %p421 = scmp.eq.s32.totalorder %s41, 0
      %p422 = por %p420, %p421
      %p423 = scmp.ne.s32.totalorder %s411, %s412
      %p424 = scmp.eq.s32.totalorder %s42, 4
      %p425 = por %p423, %p424
      %p427 = scmp.ne.s32.totalorder %s412, %s426
      %p428 = scmp.eq.s32.totalorder %s42, 0
      %p429 = por %p427, %p428
      %s431 = sadd.s32 %s430, 1
      %p434 = scmp.eq.s32.totalorder %s36, 4
      %p435 = scmp.ne.s32.totalorder %s430, %s432
      %p436 = scmp.eq.s32.totalorder %s36, 0
      %p437 = por %p435, %p436
      %p438 = scmp.ne.s32.totalorder %s430, %s432
      %p439 = scmp.eq.s32.totalorder %s41, 4
      %p440 = por %p438, %p439
      %p441 = scmp.ne.s32.totalorder %s432, %s433
      %p442 = scmp.eq.s32.totalorder %s41, 0
      %p443 = por %p441, %p442
      %p444 = scmp.ne.s32.totalorder %s432, %s433
      %p445 = scmp.eq.s32.totalorder %s42, 4
      %p446 = por %p444, %p445
      %p448 = scmp.ne.s32.totalorder %s433, %s447
      %p449 = scmp.eq.s32.totalorder %s42, 0
      %p450 = por %p448, %p449
      %s452 = sadd.s32 %s451, 1
      %p455 = scmp.eq.s32.totalorder %s36, 4
      %p456 = scmp.ne.s32.totalorder %s451, %s453
      %p457 = scmp.eq.s32.totalorder %s36, 0
      %p458 = por %p456, %p457
      %p459 = scmp.ne.s32.totalorder %s451, %s453
      %p460 = scmp.eq.s32.totalorder %s41, 4
      %p461 = por %p459, %p460
      %p462 = scmp.ne.s32.totalorder %s453, %s454
      %p463 = scmp.eq.s32.totalorder %s41, 0
      %p464 = por %p462, %p463
      %p465 = scmp.ne.s32.totalorder %s453, %s454
      %p466 = scmp.eq.s32.totalorder %s42, 4
      %p467 = por %p465, %p466
      %p469 = scmp.ne.s32.totalorder %s454, %s468
      %p470 = scmp.eq.s32.totalorder %s42, 0
      %p471 = por %p469, %p470
      %s472 = ssub.s32 %s43, %s55
      %p473 = scmp.eq.s32.totalorder %s472, 0
      %s475 = sadd.s32 %s474, 1
      %s476 = scalar_select %p473, %s474, %s475
      %p479 = pneg %p473
      %p480 = scmp.eq.s32.totalorder %s36, 4
      %p481 = por %p479, %p480
      %p482 = scmp.ne.s32.totalorder %s474, %s477
      %p483 = scmp.eq.s32.totalorder %s36, 0
      %p484 = por %p482, %p483
      %p485 = scmp.ne.s32.totalorder %s474, %s477
      %p486 = scmp.eq.s32.totalorder %s41, 4
      %p487 = por %p485, %p486
      %p488 = scmp.ne.s32.totalorder %s477, %s478
      %p489 = scmp.eq.s32.totalorder %s41, 0
      %p490 = por %p488, %p489
      %p491 = scmp.ne.s32.totalorder %s477, %s478
      %p492 = scmp.eq.s32.totalorder %s42, 4
      %p493 = por %p491, %p492
      %p495 = scmp.ne.s32.totalorder %s478, %s494
      %p496 = scmp.eq.s32.totalorder %s42, 0
      %p497 = por %p495, %p496
      %p498 = scmp.le.s32.totalorder 1, %s36
      %p499 = scmp.lt.s32.totalorder %s36, 6
      %p500 = pnand %p498, %p499
      %p501 = pneg %p500
      // Predicated region
      $region9: #{tpu_custom_call.1} parent=5 // pred_check
        _
      $region10: #{tpu_custom_call.1} parent=5 // pred_check_branch
        %503 = sbr.rel (%p500) target = $region12
      $region11: #{tpu_custom_call.1} parent=5 // pred_region
        %s504 = ssub.s32 %s36, 1
        // Predicated region
        $region13: #{tpu_custom_call.1} parent=11 // pred_check
          %p505 = pneg %p74
        $region14: #{tpu_custom_call.1} parent=11 // pred_check_branch
          %507 = sbr.rel (%p505) target = $region16
        $region15: #{tpu_custom_call.1} parent=11 // pred_region
          %s509 = ssub.s32 128, 128
          %510 = vsyncadd [#allocation5], %s509
          %s511 = smul.addr %s45, 128
          %s512 = scalar_lea.hbm %s1, %s511
          %s514 = sshll.u32 [#allocation4], 4
          %s515 = int_to_ptr.vmem [resolvable:$true] %s514
          %517 = dma.hbm_to_vmem [thread:$0]  %s512, 128, %s515, [#allocation5]
        $region16: #{tpu_custom_call.1} parent=11 // pred_fallthru
          _
        // Predicated region
        $region17: #{tpu_custom_call.1} parent=11 // pred_check
          %p518 = pneg %p100
        $region18: #{tpu_custom_call.1} parent=11 // pred_check_branch
          %520 = sbr.rel (%p518) target = $region20
        $region19: #{tpu_custom_call.1} parent=11 // pred_region
          %s522 = ssub.s32 128, 128
          %523 = vsyncadd [#allocation8], %s522
          %s524 = smul.addr %s45, 128
          %s525 = scalar_lea.hbm %s2, %s524
          %s527 = sshll.u32 [#allocation7], 4
          %s528 = int_to_ptr.vmem [resolvable:$true] %s527
          %530 = dma.hbm_to_vmem [thread:$0]  %s525, 128, %s528, [#allocation8]
        $region20: #{tpu_custom_call.1} parent=11 // pred_fallthru
          _
        // Predicated region
        $region21: #{tpu_custom_call.1} parent=11 // pred_check
          %p531 = pneg %p149
        $region22: #{tpu_custom_call.1} parent=11 // pred_check_branch
          %533 = sbr.rel (%p531) target = $region24
        $region23: #{tpu_custom_call.1} parent=11 // pred_region
          _
        $region24: #{tpu_custom_call.1} parent=11 // pred_fallthru
          _
        // Predicated region
        $region25: #{tpu_custom_call.1} parent=11 // pred_check
          %p534 = pneg %p170
        $region26: #{tpu_custom_call.1} parent=11 // pred_check_branch
          %536 = sbr.rel (%p534) target = $region28
        $region27: #{tpu_custom_call.1} parent=11 // pred_region
          %s538 = ssub.s32 16, 16
          %539 = vsyncadd [#allocation8], %s538
          %s541 = sshll.u32 [#allocation9], 4
          %s542 = int_to_ptr.vmem [resolvable:$true] %s541
          %544 = dma.hbm_to_vmem [thread:$0]  %s5, 16, %s542, [#allocation8]
        $region28: #{tpu_custom_call.1} parent=11 // pred_fallthru
          _
        // Predicated region
        $region29: #{tpu_custom_call.1} parent=11 // pred_check
          %p545 = pneg %p191
        $region30: #{tpu_custom_call.1} parent=11 // pred_check_branch
          %547 = sbr.rel (%p545) target = $region32
        $region31: #{tpu_custom_call.1} parent=11 // pred_region
          %s549 = ssub.s32 256, 256
          %550 = vsyncadd [#allocation11], %s549
          %s551 = sshll.u32 [#allocation10], 4
          %s552 = int_to_ptr.vmem [resolvable:$true] %s551
          %557 = dma.hbm_to_vmem [thread:$0]  %s6, 256, %s552, [#allocation11], 128, 128, 8
        $region32: #{tpu_custom_call.1} parent=11 // pred_fallthru
          _
        // Predicated region
        $region33: #{tpu_custom_call.1} parent=11 // pred_check
          %p558 = pneg %p212
        $region34: #{tpu_custom_call.1} parent=11 // pred_check_branch
          %560 = sbr.rel (%p558) target = $region36
        $region35: #{tpu_custom_call.1} parent=11 // pred_region
          %s562 = ssub.s32 16, 16
          %563 = vsyncadd [#allocation11], %s562
          %s565 = sshll.u32 [#allocation12], 4
          %s566 = int_to_ptr.vmem [resolvable:$true] %s565
          %568 = dma.hbm_to_vmem [thread:$0]  %s7, 16, %s566, [#allocation11]
        $region36: #{tpu_custom_call.1} parent=11 // pred_fallthru
          _
        // Predicated region
        $region37: #{tpu_custom_call.1} parent=11 // pred_check
          %p569 = pneg %p233
        $region38: #{tpu_custom_call.1} parent=11 // pred_check_branch
          %571 = sbr.rel (%p569) target = $region40
        $region39: #{tpu_custom_call.1} parent=11 // pred_region
          _
        $region40: #{tpu_custom_call.1} parent=11 // pred_fallthru
          _
        // Predicated region
        $region41: #{tpu_custom_call.1} parent=11 // pred_check
          %p572 = pneg %p254
        $region42: #{tpu_custom_call.1} parent=11 // pred_check_branch
          %574 = sbr.rel (%p572) target = $region44
        $region43: #{tpu_custom_call.1} parent=11 // pred_region
          %s576 = ssub.s32 16, 16
          %577 = vsyncadd [#allocation14], %s576
          %s579 = sshll.u32 [#allocation13], 4
          %s580 = int_to_ptr.vmem [resolvable:$true] %s579
          %582 = dma.hbm_to_vmem [thread:$0]  %s9, 16, %s580, [#allocation14]
        $region44: #{tpu_custom_call.1} parent=11 // pred_fallthru
          _
        // Predicated region
        $region45: #{tpu_custom_call.1} parent=11 // pred_check
          %p583 = pneg %p275
        $region46: #{tpu_custom_call.1} parent=11 // pred_check_branch
          %585 = sbr.rel (%p583) target = $region48
        $region47: #{tpu_custom_call.1} parent=11 // pred_region
          %s587 = ssub.s32 128, 128
          %588 = vsyncadd [#allocation14], %s587
          %s590 = sshll.u32 [#allocation15], 4
          %s591 = int_to_ptr.vmem [resolvable:$true] %s590
          %593 = dma.hbm_to_vmem [thread:$0]  %s10, 128, %s591, [#allocation14]
        $region48: #{tpu_custom_call.1} parent=11 // pred_fallthru
          _
        // Predicated region
        $region49: #{tpu_custom_call.1} parent=11 // pred_check
          %p594 = pneg %p296
        $region50: #{tpu_custom_call.1} parent=11 // pred_check_branch
          %596 = sbr.rel (%p594) target = $region52
        $region51: #{tpu_custom_call.1} parent=11 // pred_region
          _
        $region52: #{tpu_custom_call.1} parent=11 // pred_fallthru
          _
        // Predicated region
        $region53: #{tpu_custom_call.1} parent=11 // pred_check
          %p597 = pneg %p317
        $region54: #{tpu_custom_call.1} parent=11 // pred_check_branch
          %599 = sbr.rel (%p597) target = $region56
        $region55: #{tpu_custom_call.1} parent=11 // pred_region
          %s601 = ssub.s32 256, 256
          %602 = vsyncadd [#allocation17], %s601
          %s603 = sshll.u32 [#allocation16], 4
          %s604 = int_to_ptr.vmem [resolvable:$true] %s603
          %609 = dma.hbm_to_vmem [thread:$0]  %s12, 256, %s604, [#allocation17], 128, 128, 8
        $region56: #{tpu_custom_call.1} parent=11 // pred_fallthru
          _
        // Predicated region
        $region57: #{tpu_custom_call.1} parent=11 // pred_check
          %p610 = pneg %p338
        $region58: #{tpu_custom_call.1} parent=11 // pred_check_branch
          %612 = sbr.rel (%p610) target = $region60
        $region59: #{tpu_custom_call.1} parent=11 // pred_region
          _
        $region60: #{tpu_custom_call.1} parent=11 // pred_fallthru
          _
        // Predicated region
        $region61: #{tpu_custom_call.1} parent=11 // pred_check
          %p613 = pneg %p359
        $region62: #{tpu_custom_call.1} parent=11 // pred_check_branch
          %615 = sbr.rel (%p613) target = $region64
        $region63: #{tpu_custom_call.1} parent=11 // pred_region
          _
        $region64: #{tpu_custom_call.1} parent=11 // pred_fallthru
          _
        // Predicated region
        $region65: #{tpu_custom_call.1} parent=11 // pred_check
          %p616 = pneg %p380
        $region66: #{tpu_custom_call.1} parent=11 // pred_check_branch
          %618 = sbr.rel (%p616) target = $region68
        $region67: #{tpu_custom_call.1} parent=11 // pred_region
          _
        $region68: #{tpu_custom_call.1} parent=11 // pred_fallthru
          _
        // Predicated region
        $region69: #{tpu_custom_call.1} parent=11 // pred_check
          %p619 = pneg %p401
        $region70: #{tpu_custom_call.1} parent=11 // pred_check_branch
          %621 = sbr.rel (%p619) target = $region72
        $region71: #{tpu_custom_call.1} parent=11 // pred_region
          _
        $region72: #{tpu_custom_call.1} parent=11 // pred_fallthru
          _
        // Predicated region
        $region73: #{tpu_custom_call.1} parent=11 // pred_check
          %p622 = pneg %p422
        $region74: #{tpu_custom_call.1} parent=11 // pred_check_branch
          %624 = sbr.rel (%p622) target = $region76
        $region75: #{tpu_custom_call.1} parent=11 // pred_region
          _
        $region76: #{tpu_custom_call.1} parent=11 // pred_fallthru
          _
        // Predicated region
        $region77: #{tpu_custom_call.1} parent=11 // pred_check
          %p625 = pneg %p443
        $region78: #{tpu_custom_call.1} parent=11 // pred_check_branch
          %627 = sbr.rel (%p625) target = $region80
        $region79: #{tpu_custom_call.1} parent=11 // pred_region
          _
        $region80: #{tpu_custom_call.1} parent=11 // pred_fallthru
          _
        // Predicated region
        $region81: #{tpu_custom_call.1} parent=11 // pred_check
          %p628 = pneg %p464
        $region82: #{tpu_custom_call.1} parent=11 // pred_check_branch
          %630 = sbr.rel (%p628) target = $region84
        $region83: #{tpu_custom_call.1} parent=11 // pred_region
          _
        $region84: #{tpu_custom_call.1} parent=11 // pred_fallthru
          _
      $region12: #{tpu_custom_call.1} parent=5 // pred_fallthru
        _
      %p631 = scmp.lt.s32.totalorder %s36, 5
      // Predicated region
      $region85: #{tpu_custom_call.1} parent=5 // pred_check
        %p632 = pneg %p631
      $region86: #{tpu_custom_call.1} parent=5 // pred_check_branch
        %634 = sbr.rel (%p632) target = $region88
      $region87: #{tpu_custom_call.1} parent=5 // pred_region
        // Predicated region
        $region89: #{tpu_custom_call.1} parent=87 // pred_check
          %p635 = pneg %p122
        $region90: #{tpu_custom_call.1} parent=87 // pred_check_branch
          %637 = sbr.rel (%p635) target = $region92
        $region91: #{tpu_custom_call.1} parent=87 // pred_region
          %p638 = scmp.lt.s32.totalorder %s44, 4
          %s639 = scalar_select %p638, %s44, 4
          %p640 = scmp.lt.s32.totalorder %s43, 0
          %s641 = scalar_select %p640, %s43, 0
          %s642 = sadd.s32 %s641, %s639
          %s643 = smul.addr %s642, 8
          %s644 = scalar_lea.vmem %s3, %s643
        $region92: #{tpu_custom_call.1} parent=87 // pred_fallthru
          _
      $region88: #{tpu_custom_call.1} parent=5 // pred_fallthru
        _
      %p645 = scmp.le.s32.totalorder 1, %s36
      %p646 = scmp.lt.s32.totalorder %s36, 6
      %p647 = pnand %p645, %p646
      %p648 = pneg %p647
      // Predicated region
      $region93: #{tpu_custom_call.1} parent=5 // pred_check
        _
      $region94: #{tpu_custom_call.1} parent=5 // pred_check_branch
        %650 = sbr.rel (%p647) target = $region96
      $region95: #{tpu_custom_call.1} parent=5 // pred_region
        %s651 = ssub.s32 %s36, 1
        // Predicated region
        $region97: #{tpu_custom_call.1} parent=95 // pred_check
          %p652 = pneg %p74
        $region98: #{tpu_custom_call.1} parent=95 // pred_check_branch
          %654 = sbr.rel (%p652) target = $region100
        $region99: #{tpu_custom_call.1} parent=95 // pred_region
          %655 = dma.done [#allocation5], 128
        $region100: #{tpu_custom_call.1} parent=95 // pred_fallthru
          _
        // Predicated region
        $region101: #{tpu_custom_call.1} parent=95 // pred_check
          %p656 = pneg %p100
        $region102: #{tpu_custom_call.1} parent=95 // pred_check_branch
          %658 = sbr.rel (%p656) target = $region104
        $region103: #{tpu_custom_call.1} parent=95 // pred_region
          %659 = dma.done [#allocation8], 128
        $region104: #{tpu_custom_call.1} parent=95 // pred_fallthru
          _
        // Predicated region
        $region105: #{tpu_custom_call.1} parent=95 // pred_check
          %p660 = pneg %p170
        $region106: #{tpu_custom_call.1} parent=95 // pred_check_branch
          %662 = sbr.rel (%p660) target = $region108
        $region107: #{tpu_custom_call.1} parent=95 // pred_region
          %663 = dma.done [#allocation8], 16
        $region108: #{tpu_custom_call.1} parent=95 // pred_fallthru
          _
        // Predicated region
        $region109: #{tpu_custom_call.1} parent=95 // pred_check
          %p664 = pneg %p191
        $region110: #{tpu_custom_call.1} parent=95 // pred_check_branch
          %666 = sbr.rel (%p664) target = $region112
        $region111: #{tpu_custom_call.1} parent=95 // pred_region
          %667 = dma.done [#allocation11], 256
        $region112: #{tpu_custom_call.1} parent=95 // pred_fallthru
          _
        // Predicated region
        $region113: #{tpu_custom_call.1} parent=95 // pred_check
          %p668 = pneg %p212
        $region114: #{tpu_custom_call.1} parent=95 // pred_check_branch
          %670 = sbr.rel (%p668) target = $region116
        $region115: #{tpu_custom_call.1} parent=95 // pred_region
          %671 = dma.done [#allocation11], 16
        $region116: #{tpu_custom_call.1} parent=95 // pred_fallthru
          _
        // Predicated region
        $region117: #{tpu_custom_call.1} parent=95 // pred_check
          %p672 = pneg %p254
        $region118: #{tpu_custom_call.1} parent=95 // pred_check_branch
          %674 = sbr.rel (%p672) target = $region120
        $region119: #{tpu_custom_call.1} parent=95 // pred_region
          %675 = dma.done [#allocation14], 16
        $region120: #{tpu_custom_call.1} parent=95 // pred_fallthru
          _
        // Predicated region
        $region121: #{tpu_custom_call.1} parent=95 // pred_check
          %p676 = pneg %p275
        $region122: #{tpu_custom_call.1} parent=95 // pred_check_branch
          %678 = sbr.rel (%p676) target = $region124
        $region123: #{tpu_custom_call.1} parent=95 // pred_region
          %679 = dma.done [#allocation14], 128
        $region124: #{tpu_custom_call.1} parent=95 // pred_fallthru
          _
        // Predicated region
        $region125: #{tpu_custom_call.1} parent=95 // pred_check
          %p680 = pneg %p317
        $region126: #{tpu_custom_call.1} parent=95 // pred_check_branch
          %682 = sbr.rel (%p680) target = $region128
        $region127: #{tpu_custom_call.1} parent=95 // pred_region
          %683 = dma.done [#allocation17], 256
        $region128: #{tpu_custom_call.1} parent=95 // pred_fallthru
          _
        %p684 = pneg %p74
        %p685 = pneg %p71
        %p686 = pneg %p100
        %p687 = pneg %p97
        %p688 = scmp.lt.s32.totalorder %s46, 4
        %s689 = scalar_select %p688, %s46, 4
        %p690 = scmp.lt.s32.totalorder %s45, 0
        %s691 = scalar_select %p690, %s45, 0
        %s692 = sadd.s32 %s691, %s689
        %s693 = smul.addr %s692, 8
        %s694 = scalar_lea.vmem %s3, %s693
        %p695 = pneg %p128
        %p696 = pneg %p125
        %p697 = pneg %p149
        %p698 = pneg %p146
        %p699 = pneg %p170
        %p700 = pneg %p167
        %p701 = pneg %p191
        %p702 = pneg %p188
        %p703 = pneg %p212
        %p704 = pneg %p209
        %p705 = pneg %p233
        %p706 = pneg %p230
        %p707 = pneg %p254
        %p708 = pneg %p251
        %p709 = pneg %p275
        %p710 = pneg %p272
        %p711 = pneg %p296
        %p712 = pneg %p293
        %p713 = pneg %p317
        %p714 = pneg %p314
        %p715 = pneg %p338
        %p716 = pneg %p335
        %p717 = pneg %p359
        %p718 = pneg %p356
        %p719 = pneg %p380
        %p720 = pneg %p377
        %p721 = pneg %p401
        %p722 = pneg %p398
        %p723 = pneg %p422
        %p724 = pneg %p419
        %p725 = pneg %p443
        %p726 = pneg %p440
        %p727 = pneg %p464
        %p728 = pneg %p461
        %p729 = pneg %p490
        %p730 = pneg %p487
        %p731 = scmp.lt.s32.totalorder %s46, 4
        %s732 = scalar_select %p731, %s46, 4
        %p733 = scmp.lt.s32.totalorder %s45, 0
        %s734 = scalar_select %p733, %s45, 0
        %s735 = sadd.s32 %s734, %s732
        %s736 = smul.addr %s735, 8
        %s737 = scalar_lea.vmem %s3, %s736
        %p738 = scmp.eq.s32.totalorder %s46, 0
        // Predicated region
        $region129: #{tpu_custom_call.1} parent=95 // pred_check
          %p739 = pneg %p738
        $region130: #{tpu_custom_call.1} parent=95 // pred_check_branch
          %741 = sbr.rel (%p739) target = $region132
        $region131: #{tpu_custom_call.1} parent=95 // pred_region
          %v742 = vld [vmem:[#allocation4] sm:$0xff]
          %vm743 = vcmask 64512
          %744 = vst.msk [vmem:[#allocation18] sm:$0xff] %vm743, %v742
        $region132: #{tpu_custom_call.1} parent=95 // pred_fallthru
          _
        %v745 = vld [vmem:[#allocation18] sm:$0xff]
        %v746 = vld [vmem:[#allocation7] sm:$0xff]
        %s747 = smul.u32 %s46, 128
        %s748 = sld [smem:[#allocation3 + %s747]]
        %s749 = sadd.s32 %s747, 1
        %s750 = sld [smem:[#allocation3 + %s749]]
        %s751 = sadd.s32 %s747, 2
        %s752 = sld [smem:[#allocation3 + %s751]]
        %s753 = sadd.s32 %s747, 3
        %s754 = sld [smem:[#allocation3 + %s753]]
        %s755 = sadd.s32 %s747, 4
        %s756 = sld [smem:[#allocation3 + %s755]]
        %s757 = sadd.s32 %s747, 5
        %s758 = sld [smem:[#allocation3 + %s757]]
        %s759 = sadd.s32 %s747, 6
        %s760 = sld [smem:[#allocation3 + %s759]]
        %v761 = vld [vmem:[%s4] sm:$0x1]
        %v762 = vstv %s760
        %v763 = vmul.f32 %v762, %v761
        %v764 = vld [vmem:[#allocation9] sm:$0x1]
        %v765 = vadd.f32 %v763, %v764
        %v766 = vand.u32 2147483647, %v765
        %vm767 = vcmp.le.f32.partialorder %v766, 0.7853982
        %vm768 = vcmp.lt.s32.totalorder %v765, 0
        %v769 = vand.u32 %v765, 2139095040
        %v770 = vshrl.u32 %v769, 23
        %v771 = vsub.s32 %v770, 127
        %v772 = vand.u32 2147483647, %v765
        %v773 = vand.u32 %v772, 8388607
        %v774 = vor.u32 %v773, 8388608
        %v775 = vsub.s32 0, %v774
        %v776 = vadd.s32 %v771, 1
        %vm777 = vcmp.gt.s32.totalorder %v776, 0
        %v778 = vsel %vm777, %v776, 0
        %v779 = vshrl.u32 %v778, 5
        %v780 = vand.u32 %v778, 31
        %v781 = vsub.s32 32, %v780
        %v782 = vshrl.u32 683565275, %v781
        %v783 = vshll.u32 683565275, %v780
        %v784 = vshrl.u32 2475754826, %v781
        %v785 = vor.u32 %v783, %v784
        %v786 = vshll.u32 2475754826, %v780
        %v787 = vshrl.u32 2131351028, %v781
        %v788 = vor.u32 %v786, %v787
        %v789 = vshll.u32 2131351028, %v780
        %v790 = vshrl.u32 2102212464, %v781
        %v791 = vor.u32 %v789, %v790
        %v792 = vshll.u32 2102212464, %v780
        %v793 = vshrl.u32 920167782, %v781
        %v794 = vor.u32 %v792, %v793
        %v795 = vshll.u32 920167782, %v780
        %v796 = vshrl.u32 1326507024, %v781
        %v797 = vor.u32 %v795, %v796
        %vm798 = vcmp.lt.s32.totalorder %v779, 1
        %vm799 = vcmp.lt.s32.totalorder %v779, 2
        %vm800 = vcmp.lt.s32.totalorder %v779, 3
        %vm801 = vcmp.lt.s32.totalorder %v779, 4
        %v802 = vsel %vm798, %v782, %v785
        %v803 = vsel %vm801, %v791, 2102212464
        %v804 = vsel %vm800, %v788, %v803
        %v805 = vsel %vm799, %v802, %v804
        %v806 = vsel %vm798, %v785, %v788
        %v807 = vsel %vm801, %v794, 920167782
        %v808 = vsel %vm800, %v791, %v807
        %v809 = vsel %vm799, %v806, %v808
        %v810 = vsel %vm798, %v788, %v791
        %v811 = vsel %vm801, %v797, 1326507024
        %v812 = vsel %vm800, %v794, %v811
        %v813 = vsel %vm799, %v810, %v812
        %v814 = vshll.u32 %v774, 8
        %v815 = vmul.u32.u64.compose %v814, %v813
        %v816 = vextract.low.u32 %v815
        %v817 = vextract.high.u32 %v815
        %v818 = vmul.u32.u64.compose %v814, %v809
        %v819 = vextract.low.u32 %v818
        %v820 = vextract.high.u32 %v818
        %v821 = vmul.u32 %v814, %v805
        %v822 = vadd.s32 %v817, %v819
        %vm823 = vc.u32 %v817, %v819
        %v824 = vadd.s32 %v820, 1
        %v825 = vsel %vm823, %v824, %v820
        %v826 = vadd.s32 %v821, %v825
        %v827 = vadd.s32 %v826, 536870912
        %v828 = vshrl.u32 %v827, 30
        %v829 = vshll.u32 %v828, 30
        %v830 = vsub.s32 %v826, %v829
        %vm831 = vcmp.lt.s32.totalorder %v830, 0
        %v832 = vsub.s32 0, %v830
        %v833 = vsel %vm831, %v832, %v830
        %v834 = vclz %v833
        %v835 = vsub.s32 %v834, 2
        %vm836 = vcmp.gt.s32.totalorder 0, %v835
        %v837 = vsel %vm836, 0, %v835
        %v838 = vsub.s32 32, %v837
        %v839 = vshll.u32 %v830, %v837
        %v840 = vshrl.u32 %v822, %v838
        %v841 = vor.u32 %v839, %v840
        %v842 = vsub.s32 4294967266, %v837
        %v843 = vadd.s32 %v842, 127
        %v844 = vshll.u32 %v843, 23
        %v845 = vor.u32 4788187, %v844
        %v846 = vand.u32 2147483647, %v845
        %v848 = vcvt.s32.f32 %v841
        %v849 = vmul.f32 %v848, %v846
        %v850 = vxor.u32 %v849, 2147483648
        %v851 = vsel %vm768, %v850, %v849
        %v852 = vsub.s32 4, %v828
        %v853 = vsel %vm768, %v852, %v828
        %v854 = vsel %vm767, %v765, %v851
        %v855 = vsel %vm767, 0, %v853
        %v856 = vcosq.f32.pop %v854
        %v857 = vsinq.f32.pop %v854
        %vm858 = vweird.f32 %v765
        %v859 = vadd.s32 %v855, 3
        %v860 = vand.u32 %v859, 3
        %vm861 = vcmp.lt.s32.totalorder %v860, 2
        %vm862 = vcmp.eq.s32.totalorder %v860, 0
        %v863 = vxor.u32 %v857, 2147483648
        %v864 = vsel %vm862, %v856, %v863
        %vm865 = vcmp.eq.s32.totalorder %v860, 2
        %v866 = vxor.u32 %v856, 2147483648
        %v867 = vsel %vm865, %v866, %v857
        %v868 = vsel %vm861, %v864, %v867
        %v869 = vsel %vm858, nan, %v868
        %v870 = vld [vmem:[#allocation10] sm:$0xff]
        %v871 = vld [vmem:[#allocation10 + $0x8] sm:$0xff]
        %v872 = vld [vmem:[#allocation12] sm:$0x1]
        %vm873 = vcmask 130048
        %v875 = vsel %vm873, %v869, 0
        %877 = vmatprep.subr.mxu0 0.0
        %878 = vmatpush1.msra.mxu0 %v870
        %879 = vmatprep.subr.mxu0 0.0
        %880 = vmatpush1.msra.mxu0 %v871
        %881 = vmatprep.subr.mxu0 0.0
        %882 = vmatpush1.msra.mxu0 0.0
        %883 = vmatprep.subr.mxu0 0.0
        %884 = vmatpush1.msra.mxu0 0.0
        %885 = vmatprep.subr.mxu0 0.0
        %886 = vmatpush1.msra.mxu0 0.0
        %887 = vmatprep.subr.mxu0 0.0
        %888 = vmatpush1.msra.mxu0 0.0
        %889 = vmatprep.subr.mxu0 0.0
        %890 = vmatpush1.msra.mxu0 0.0
        %891 = vmatprep.subr.mxu0 0.0
        %892 = vmatpush1.msra.mxu0 0.0
        %893 = vmatprep.subr.mxu0 0.0
        %894 = vmatpush1.msra.mxu0 0.0
        %895 = vmatprep.subr.mxu0 0.0
        %896 = vmatpush1.msra.mxu0 0.0
        %897 = vmatprep.subr.mxu0 0.0
        %898 = vmatpush1.msra.mxu0 0.0
        %899 = vmatprep.subr.mxu0 0.0
        %900 = vmatpush1.msra.mxu0 0.0
        %901 = vmatprep.subr.mxu0 0.0
        %902 = vmatpush1.msra.mxu0 0.0
        %903 = vmatprep.subr.mxu0 0.0
        %904 = vmatpush1.msra.mxu0 0.0
        %905 = vmatprep.subr.mxu0 0.0
        %906 = vmatpush1.msra.mxu0 0.0
        %907 = vmatprep.subr.mxu0 0.0
        %908 = vmatpush1.msra.mxu0 0.0
        %909 = vmatprep.subr.mxu0 0.0
        %910 = vmatpush1.msra.mxu0 0.0
        %911 = vmatprep.subr.mxu0 0.0
        %912 = vmatpush1.msra.mxu0 0.0
        %913 = vmatprep.subr.mxu0 0.0
        %914 = vmatpush1.msra.mxu0 0.0
        %915 = vmatprep.subr.mxu0 0.0
        %916 = vmatpush1.msra.mxu0 0.0
        %917 = vmatprep.subr.mxu0 0.0
        %918 = vmatpush1.msra.mxu0 0.0
        %919 = vmatprep.subr.mxu0 0.0
        %920 = vmatpush1.msra.mxu0 0.0
        %921 = vmatprep.subr.mxu0 0.0
        %922 = vmatpush1.msra.mxu0 0.0
        %923 = vmatprep.subr.mxu0 0.0
        %924 = vmatpush1.msra.mxu0 0.0
        %925 = vmatprep.subr.mxu0 0.0
        %926 = vmatpush1.msra.mxu0 0.0
        %927 = vmatprep.subr.mxu0 0.0
        %928 = vmatpush1.msra.mxu0 0.0
        %929 = vmatprep.subr.mxu0 0.0
        %930 = vmatpush1.msra.mxu0 0.0
        %931 = vmatprep.subr.mxu0 0.0
        %932 = vmatpush1.msra.mxu0 0.0
        %933 = vmatprep.subr.mxu0 0.0
        %934 = vmatpush1.msra.mxu0 0.0
        %935 = vmatprep.subr.mxu0 0.0
        %936 = vmatpush1.msra.mxu0 0.0
        %937 = vmatprep.subr.mxu0 0.0
        %938 = vmatpush1.msra.mxu0 0.0
        %939 = vmatprep.subr.mxu0 0.0
        %940 = vmatpush1.msra.mxu0 0.0
        %941 = vmatprep.mubr.f32.mxu0 0.0
        %942 = vmatmul.mubr.f32.gmra.mrb[0].mxu0 %v875
        %v943 = vpop.f32.mrb[0].mxu0
        %v944 = vadd.f32 %v872, %v943
        %v945 = vpop.f32.mrb[0].mxu0
        %946 = vdwg.mxu0
        %v947 = vmul.f32 %v944, 1.442695
        %v948 = vpow.pop %v947
        %v949 = vadd.f32 %v948, 1.0
        %v950 = vlog2.pop %v949
        %v951 = vmul.f32 %v950, 0.6931472
        %v952 = vmul.f32 -0.5, %v948
        %v953 = vadd.f32 %v952, 1.0
        %v954 = vmul.f32 %v953, %v948
        %v955 = vand.u32 2147483647, %v948
        %vm956 = vcmp.lt.f32.partialorder %v955, 0.0004427343
        %v957 = vsel %vm956, %v954, %v951
        %v958 = vtanh.pop %v957
        %v959 = vmul.f32 %v944, %v958
        %v960 = vld [vmem:[%s8] sm:$0xff]
        %v961 = vld [vmem:[%s8 + $0x8] sm:$0xff]
        %v962 = vld [vmem:[%s8 + $0x10] sm:$0xff]
        %v963 = vld [vmem:[%s8 + $0x18] sm:$0xff]
        %v964 = vld [vmem:[#allocation13] sm:$0x1]
        %vm965 = vcmask 261120
        %v967 = vsel %vm965, %v959, 0
        %969 = vmatprep.subr.mxu0 0.0
        %970 = vmatpush1.msra.mxu0 %v960
        %971 = vmatprep.subr.mxu0 0.0
        %972 = vmatpush1.msra.mxu0 %v961
        %973 = vmatprep.subr.mxu0 0.0
        %974 = vmatpush1.msra.mxu0 %v962
        %975 = vmatprep.subr.mxu0 0.0
        %976 = vmatpush1.msra.mxu0 %v963
        %977 = vmatprep.subr.mxu0 0.0
        %978 = vmatpush1.msra.mxu0 0.0
        %979 = vmatprep.subr.mxu0 0.0
        %980 = vmatpush1.msra.mxu0 0.0
        %981 = vmatprep.subr.mxu0 0.0
        %982 = vmatpush1.msra.mxu0 0.0
        %983 = vmatprep.subr.mxu0 0.0
        %984 = vmatpush1.msra.mxu0 0.0
        %985 = vmatprep.subr.mxu0 0.0
        %986 = vmatpush1.msra.mxu0 0.0
        %987 = vmatprep.subr.mxu0 0.0
        %988 = vmatpush1.msra.mxu0 0.0
        %989 = vmatprep.subr.mxu0 0.0
        %990 = vmatpush1.msra.mxu0 0.0
        %991 = vmatprep.subr.mxu0 0.0
        %992 = vmatpush1.msra.mxu0 0.0
        %993 = vmatprep.subr.mxu0 0.0
        %994 = vmatpush1.msra.mxu0 0.0
        %995 = vmatprep.subr.mxu0 0.0
        %996 = vmatpush1.msra.mxu0 0.0
        %997 = vmatprep.subr.mxu0 0.0
        %998 = vmatpush1.msra.mxu0 0.0
        %999 = vmatprep.subr.mxu0 0.0
        %1000 = vmatpush1.msra.mxu0 0.0
        %1001 = vmatprep.subr.mxu0 0.0
        %1002 = vmatpush1.msra.mxu0 0.0
        %1003 = vmatprep.subr.mxu0 0.0
        %1004 = vmatpush1.msra.mxu0 0.0
        %1005 = vmatprep.subr.mxu0 0.0
        %1006 = vmatpush1.msra.mxu0 0.0
        %1007 = vmatprep.subr.mxu0 0.0
        %1008 = vmatpush1.msra.mxu0 0.0
        %1009 = vmatprep.subr.mxu0 0.0
        %1010 = vmatpush1.msra.mxu0 0.0
        %1011 = vmatprep.subr.mxu0 0.0
        %1012 = vmatpush1.msra.mxu0 0.0
        %1013 = vmatprep.subr.mxu0 0.0
        %1014 = vmatpush1.msra.mxu0 0.0
        %1015 = vmatprep.subr.mxu0 0.0
        %1016 = vmatpush1.msra.mxu0 0.0
        %1017 = vmatprep.subr.mxu0 0.0
        %1018 = vmatpush1.msra.mxu0 0.0
        %1019 = vmatprep.subr.mxu0 0.0
        %1020 = vmatpush1.msra.mxu0 0.0
        %1021 = vmatprep.subr.mxu0 0.0
        %1022 = vmatpush1.msra.mxu0 0.0
        %1023 = vmatprep.subr.mxu0 0.0
        %1024 = vmatpush1.msra.mxu0 0.0
        %1025 = vmatprep.subr.mxu0 0.0
        %1026 = vmatpush1.msra.mxu0 0.0
        %1027 = vmatprep.subr.mxu0 0.0
        %1028 = vmatpush1.msra.mxu0 0.0
        %1029 = vmatprep.subr.mxu0 0.0
        %1030 = vmatpush1.msra.mxu0 0.0
        %1031 = vmatprep.subr.mxu0 0.0
        %1032 = vmatpush1.msra.mxu0 0.0
        %1033 = vmatprep.mubr.f32.mxu0 0.0
        %1034 = vmatmul.mubr.f32.gmra.mrb[0].mxu0 %v967
        %v1035 = vpop.f32.mrb[0].mxu0
        %v1036 = vadd.f32 %v964, %v1035
        %v1037 = vpop.f32.mrb[0].mxu0
        %1038 = vdwg.mxu0
        %v1039 = vld [vmem:[#allocation16] sm:$0xff]
        %v1040 = vld [vmem:[#allocation16 + $0x8] sm:$0xff]
        %v1041 = vld [vmem:[%s13] sm:$0x1]
        %v1043 = vsel %vm873, %v1036, 0
        %1045 = vmatprep.subr.mxu0 0.0
        %1046 = vmatpush1.msra.mxu0 %v1039
        %1047 = vmatprep.subr.mxu0 0.0
        %1048 = vmatpush1.msra.mxu0 %v1040
        %1049 = vmatprep.subr.mxu0 0.0
        %1050 = vmatpush1.msra.mxu0 0.0
        %1051 = vmatprep.subr.mxu0 0.0
        %1052 = vmatpush1.msra.mxu0 0.0
        %1053 = vmatprep.subr.mxu0 0.0
        %1054 = vmatpush1.msra.mxu0 0.0
        %1055 = vmatprep.subr.mxu0 0.0
        %1056 = vmatpush1.msra.mxu0 0.0
        %1057 = vmatprep.subr.mxu0 0.0
        %1058 = vmatpush1.msra.mxu0 0.0
        %1059 = vmatprep.subr.mxu0 0.0
        %1060 = vmatpush1.msra.mxu0 0.0
        %1061 = vmatprep.subr.mxu0 0.0
        %1062 = vmatpush1.msra.mxu0 0.0
        %1063 = vmatprep.subr.mxu0 0.0
        %1064 = vmatpush1.msra.mxu0 0.0
        %1065 = vmatprep.subr.mxu0 0.0
        %1066 = vmatpush1.msra.mxu0 0.0
        %1067 = vmatprep.subr.mxu0 0.0
        %1068 = vmatpush1.msra.mxu0 0.0
        %1069 = vmatprep.subr.mxu0 0.0
        %1070 = vmatpush1.msra.mxu0 0.0
        %1071 = vmatprep.subr.mxu0 0.0
        %1072 = vmatpush1.msra.mxu0 0.0
        %1073 = vmatprep.subr.mxu0 0.0
        %1074 = vmatpush1.msra.mxu0 0.0
        %1075 = vmatprep.subr.mxu0 0.0
        %1076 = vmatpush1.msra.mxu0 0.0
        %1077 = vmatprep.subr.mxu0 0.0
        %1078 = vmatpush1.msra.mxu0 0.0
        %1079 = vmatprep.subr.mxu0 0.0
        %1080 = vmatpush1.msra.mxu0 0.0
        %1081 = vmatprep.subr.mxu0 0.0
        %1082 = vmatpush1.msra.mxu0 0.0
        %1083 = vmatprep.subr.mxu0 0.0
        %1084 = vmatpush1.msra.mxu0 0.0
        %1085 = vmatprep.subr.mxu0 0.0
        %1086 = vmatpush1.msra.mxu0 0.0
        %1087 = vmatprep.subr.mxu0 0.0
        %1088 = vmatpush1.msra.mxu0 0.0
        %1089 = vmatprep.subr.mxu0 0.0
        %1090 = vmatpush1.msra.mxu0 0.0
        %1091 = vmatprep.subr.mxu0 0.0
        %1092 = vmatpush1.msra.mxu0 0.0
        %1093 = vmatprep.subr.mxu0 0.0
        %1094 = vmatpush1.msra.mxu0 0.0
        %1095 = vmatprep.subr.mxu0 0.0
        %1096 = vmatpush1.msra.mxu0 0.0
        %1097 = vmatprep.subr.mxu0 0.0
        %1098 = vmatpush1.msra.mxu0 0.0
        %1099 = vmatprep.subr.mxu0 0.0
        %1100 = vmatpush1.msra.mxu0 0.0
        %1101 = vmatprep.subr.mxu0 0.0
        %1102 = vmatpush1.msra.mxu0 0.0
        %1103 = vmatprep.subr.mxu0 0.0
        %1104 = vmatpush1.msra.mxu0 0.0
        %1105 = vmatprep.subr.mxu0 0.0
        %1106 = vmatpush1.msra.mxu0 0.0
        %1107 = vmatprep.subr.mxu0 0.0
        %1108 = vmatpush1.msra.mxu0 0.0
        %1109 = vmatprep.mubr.f32.mxu0 0.0
        %1110 = vmatmul.mubr.f32.gmra.mrb[0].mxu0 %v1043
        %v1111 = vpop.f32.mrb[0].mxu0
        %v1112 = vadd.f32 %v1041, %v1111
        %v1113 = vpop.f32.mrb[0].mxu0
        %1114 = vdwg.mxu0
        %v1115 = vld [vmem:[#allocation15] sm:$0xff]
        %v1116 = vld [vmem:[%s11] sm:$0xff]
        %v1117 = vld [vmem:[%s11 + $0x8] sm:$0xff]
        %v1119 = vsel %vm873, %v746, 0
        %1121 = vmatprep.subr.mxu0 0.0
        %1122 = vmatpush1.msra.mxu0 %v1116
        %1123 = vmatprep.subr.mxu0 0.0
        %1124 = vmatpush1.msra.mxu0 %v1117
        %1125 = vmatprep.subr.mxu0 0.0
        %1126 = vmatpush1.msra.mxu0 0.0
        %1127 = vmatprep.subr.mxu0 0.0
        %1128 = vmatpush1.msra.mxu0 0.0
        %1129 = vmatprep.subr.mxu0 0.0
        %1130 = vmatpush1.msra.mxu0 0.0
        %1131 = vmatprep.subr.mxu0 0.0
        %1132 = vmatpush1.msra.mxu0 0.0
        %1133 = vmatprep.subr.mxu0 0.0
        %1134 = vmatpush1.msra.mxu0 0.0
        %1135 = vmatprep.subr.mxu0 0.0
        %1136 = vmatpush1.msra.mxu0 0.0
        %1137 = vmatprep.subr.mxu0 0.0
        %1138 = vmatpush1.msra.mxu0 0.0
        %1139 = vmatprep.subr.mxu0 0.0
        %1140 = vmatpush1.msra.mxu0 0.0
        %1141 = vmatprep.subr.mxu0 0.0
        %1142 = vmatpush1.msra.mxu0 0.0
        %1143 = vmatprep.subr.mxu0 0.0
        %1144 = vmatpush1.msra.mxu0 0.0
        %1145 = vmatprep.subr.mxu0 0.0
        %1146 = vmatpush1.msra.mxu0 0.0
        %1147 = vmatprep.subr.mxu0 0.0
        %1148 = vmatpush1.msra.mxu0 0.0
        %1149 = vmatprep.subr.mxu0 0.0
        %1150 = vmatpush1.msra.mxu0 0.0
        %1151 = vmatprep.subr.mxu0 0.0
        %1152 = vmatpush1.msra.mxu0 0.0
        %1153 = vmatprep.subr.mxu0 0.0
        %1154 = vmatpush1.msra.mxu0 0.0
        %1155 = vmatprep.subr.mxu0 0.0
        %1156 = vmatpush1.msra.mxu0 0.0
        %1157 = vmatprep.subr.mxu0 0.0
        %1158 = vmatpush1.msra.mxu0 0.0
        %1159 = vmatprep.subr.mxu0 0.0
        %1160 = vmatpush1.msra.mxu0 0.0
        %1161 = vmatprep.subr.mxu0 0.0
        %1162 = vmatpush1.msra.mxu0 0.0
        %1163 = vmatprep.subr.mxu0 0.0
        %1164 = vmatpush1.msra.mxu0 0.0
        %1165 = vmatprep.subr.mxu0 0.0
        %1166 = vmatpush1.msra.mxu0 0.0
        %1167 = vmatprep.subr.mxu0 0.0
        %1168 = vmatpush1.msra.mxu0 0.0
        %1169 = vmatprep.subr.mxu0 0.0
        %1170 = vmatpush1.msra.mxu0 0.0
        %1171 = vmatprep.subr.mxu0 0.0
        %1172 = vmatpush1.msra.mxu0 0.0
        %1173 = vmatprep.subr.mxu0 0.0
        %1174 = vmatpush1.msra.mxu0 0.0
        %1175 = vmatprep.subr.mxu0 0.0
        %1176 = vmatpush1.msra.mxu0 0.0
        %1177 = vmatprep.subr.mxu0 0.0
        %1178 = vmatpush1.msra.mxu0 0.0
        %1179 = vmatprep.subr.mxu0 0.0
        %1180 = vmatpush1.msra.mxu0 0.0
        %1181 = vmatprep.subr.mxu0 0.0
        %1182 = vmatpush1.msra.mxu0 0.0
        %1183 = vmatprep.subr.mxu0 0.0
        %1184 = vmatpush1.msra.mxu0 0.0
        %1185 = vmatprep.mubr.f32.mxu0 0.0
        %1186 = vmatmul.mubr.f32.gmra.mrb[0].mxu0 %v1119
        %v1187 = vpop.f32.mrb[0].mxu0
        %v1188 = vadd.f32 0.0, %v1187
        %v1189 = vpop.f32.mrb[0].mxu0
        %1190 = vdwg.mxu0
        %vm1191 = vcmask 64512
        %v1193 = vsel %vm1191, %v745, 0
        %1195 = vmatprep.subr.mxu0 0.0
        %1196 = vmatpush1.msra.mxu0 %v1115
        %1197 = vmatprep.subr.mxu0 0.0
        %1198 = vmatpush1.msra.mxu0 0.0
        %1199 = vmatprep.subr.mxu0 0.0
        %1200 = vmatpush1.msra.mxu0 0.0
        %1201 = vmatprep.subr.mxu0 0.0
        %1202 = vmatpush1.msra.mxu0 0.0
        %1203 = vmatprep.subr.mxu0 0.0
        %1204 = vmatpush1.msra.mxu0 0.0
        %1205 = vmatprep.subr.mxu0 0.0
        %1206 = vmatpush1.msra.mxu0 0.0
        %1207 = vmatprep.subr.mxu0 0.0
        %1208 = vmatpush1.msra.mxu0 0.0
        %1209 = vmatprep.subr.mxu0 0.0
        %1210 = vmatpush1.msra.mxu0 0.0
        %1211 = vmatprep.subr.mxu0 0.0
        %1212 = vmatpush1.msra.mxu0 0.0
        %1213 = vmatprep.subr.mxu0 0.0
        %1214 = vmatpush1.msra.mxu0 0.0
        %1215 = vmatprep.subr.mxu0 0.0
        %1216 = vmatpush1.msra.mxu0 0.0
        %1217 = vmatprep.subr.mxu0 0.0
        %1218 = vmatpush1.msra.mxu0 0.0
        %1219 = vmatprep.subr.mxu0 0.0
        %1220 = vmatpush1.msra.mxu0 0.0
        %1221 = vmatprep.subr.mxu0 0.0
        %1222 = vmatpush1.msra.mxu0 0.0
        %1223 = vmatprep.subr.mxu0 0.0
        %1224 = vmatpush1.msra.mxu0 0.0
        %1225 = vmatprep.subr.mxu0 0.0
        %1226 = vmatpush1.msra.mxu0 0.0
        %1227 = vmatprep.subr.mxu0 0.0
        %1228 = vmatpush1.msra.mxu0 0.0
        %1229 = vmatprep.subr.mxu0 0.0
        %1230 = vmatpush1.msra.mxu0 0.0
        %1231 = vmatprep.subr.mxu0 0.0
        %1232 = vmatpush1.msra.mxu0 0.0
        %1233 = vmatprep.subr.mxu0 0.0
        %1234 = vmatpush1.msra.mxu0 0.0
        %1235 = vmatprep.subr.mxu0 0.0
        %1236 = vmatpush1.msra.mxu0 0.0
        %1237 = vmatprep.subr.mxu0 0.0
        %1238 = vmatpush1.msra.mxu0 0.0
        %1239 = vmatprep.subr.mxu0 0.0
        %1240 = vmatpush1.msra.mxu0 0.0
        %1241 = vmatprep.subr.mxu0 0.0
        %1242 = vmatpush1.msra.mxu0 0.0
        %1243 = vmatprep.subr.mxu0 0.0
        %1244 = vmatpush1.msra.mxu0 0.0
        %1245 = vmatprep.subr.mxu0 0.0
        %1246 = vmatpush1.msra.mxu0 0.0
        %1247 = vmatprep.subr.mxu0 0.0
        %1248 = vmatpush1.msra.mxu0 0.0
        %1249 = vmatprep.subr.mxu0 0.0
        %1250 = vmatpush1.msra.mxu0 0.0
        %1251 = vmatprep.subr.mxu0 0.0
        %1252 = vmatpush1.msra.mxu0 0.0
        %1253 = vmatprep.subr.mxu0 0.0
        %1254 = vmatpush1.msra.mxu0 0.0
        %1255 = vmatprep.subr.mxu0 0.0
        %1256 = vmatpush1.msra.mxu0 0.0
        %1257 = vmatprep.subr.mxu0 0.0
        %1258 = vmatpush1.msra.mxu0 0.0
        %1259 = vmatprep.mubr.f32.mxu0 0.0
        %1260 = vmatmul.mubr.f32.gmra.mrb[0].mxu0 %v1193
        %v1261 = vpop.f32.mrb[0].mxu0
        %v1262 = vadd.f32 %v1188, %v1261
        %v1263 = vpop.f32.mrb[0].mxu0
        %1264 = vdwg.mxu0
        %v1265 = vlaneseq
        %v1266 = vshrl.u32 %v1265, 7
        %v1267 = vsub.s32 0, %v1266
        %v1268 = vrot.slane %v1112, %v1267
        %v1269 = vadd.f32 %v1262, %v1268
        %v1270 = vmul.f32 %v1269, 1.442695
        %v1271 = vpow.pop %v1270
        %v1272 = vadd.f32 %v1271, 1.0
        %v1273 = vlog2.pop %v1272
        %v1274 = vmul.f32 %v1273, 0.6931472
        %v1275 = vmul.f32 -0.5, %v1271
        %v1276 = vadd.f32 %v1275, 1.0
        %v1277 = vmul.f32 %v1276, %v1271
        %v1278 = vand.u32 2147483647, %v1271
        %vm1279 = vcmp.lt.f32.partialorder %v1278, 0.0004427343
        %v1280 = vsel %vm1279, %v1277, %v1274
        %v1281 = vtanh.pop %v1280
        %v1282 = vmul.f32 %v1269, %v1281
        %v1283 = vld [vmem:[%s14] sm:$0xff]
        %v1284 = vld [vmem:[%s14 + $0x8] sm:$0xff]
        %v1285 = vld [vmem:[%s14 + $0x10] sm:$0xff]
        %v1286 = vld [vmem:[%s14 + $0x18] sm:$0xff]
        %v1287 = vld [vmem:[%s15] sm:$0x1]
        %v1289 = vlaneseq
        %v1290 = vshrl.u32 %v1289, 7
        %v1291 = vsub.s32 0, %v1290
        %v1292 = vrot.slane %v1287, %v1291
        %v1295 = vsel %vm965, %v1282, 0
        %1297 = vmatprep.subr.mxu0 0.0
        %1298 = vmatpush1.msra.mxu0 %v1283
        %1299 = vmatprep.subr.mxu0 0.0
        %1300 = vmatpush1.msra.mxu0 %v1284
        %1301 = vmatprep.subr.mxu0 0.0
        %1302 = vmatpush1.msra.mxu0 %v1285
        %1303 = vmatprep.subr.mxu0 0.0
        %1304 = vmatpush1.msra.mxu0 %v1286
        %1305 = vmatprep.subr.mxu0 0.0
        %1306 = vmatpush1.msra.mxu0 0.0
        %1307 = vmatprep.subr.mxu0 0.0
        %1308 = vmatpush1.msra.mxu0 0.0
        %1309 = vmatprep.subr.mxu0 0.0
        %1310 = vmatpush1.msra.mxu0 0.0
        %1311 = vmatprep.subr.mxu0 0.0
        %1312 = vmatpush1.msra.mxu0 0.0
        %1313 = vmatprep.subr.mxu0 0.0
        %1314 = vmatpush1.msra.mxu0 0.0
        %1315 = vmatprep.subr.mxu0 0.0
        %1316 = vmatpush1.msra.mxu0 0.0
        %1317 = vmatprep.subr.mxu0 0.0
        %1318 = vmatpush1.msra.mxu0 0.0
        %1319 = vmatprep.subr.mxu0 0.0
        %1320 = vmatpush1.msra.mxu0 0.0
        %1321 = vmatprep.subr.mxu0 0.0
        %1322 = vmatpush1.msra.mxu0 0.0
        %1323 = vmatprep.subr.mxu0 0.0
        %1324 = vmatpush1.msra.mxu0 0.0
        %1325 = vmatprep.subr.mxu0 0.0
        %1326 = vmatpush1.msra.mxu0 0.0
        %1327 = vmatprep.subr.mxu0 0.0
        %1328 = vmatpush1.msra.mxu0 0.0
        %1329 = vmatprep.subr.mxu0 0.0
        %1330 = vmatpush1.msra.mxu0 0.0
        %1331 = vmatprep.subr.mxu0 0.0
        %1332 = vmatpush1.msra.mxu0 0.0
        %1333 = vmatprep.subr.mxu0 0.0
        %1334 = vmatpush1.msra.mxu0 0.0
        %1335 = vmatprep.subr.mxu0 0.0
        %1336 = vmatpush1.msra.mxu0 0.0
        %1337 = vmatprep.subr.mxu0 0.0
        %1338 = vmatpush1.msra.mxu0 0.0
        %1339 = vmatprep.subr.mxu0 0.0
        %1340 = vmatpush1.msra.mxu0 0.0
        %1341 = vmatprep.subr.mxu0 0.0
        %1342 = vmatpush1.msra.mxu0 0.0
        %1343 = vmatprep.subr.mxu0 0.0
        %1344 = vmatpush1.msra.mxu0 0.0
        %1345 = vmatprep.subr.mxu0 0.0
        %1346 = vmatpush1.msra.mxu0 0.0
        %1347 = vmatprep.subr.mxu0 0.0
        %1348 = vmatpush1.msra.mxu0 0.0
        %1349 = vmatprep.subr.mxu0 0.0
        %1350 = vmatpush1.msra.mxu0 0.0
        %1351 = vmatprep.subr.mxu0 0.0
        %1352 = vmatpush1.msra.mxu0 0.0
        %1353 = vmatprep.subr.mxu0 0.0
        %1354 = vmatpush1.msra.mxu0 0.0
        %1355 = vmatprep.subr.mxu0 0.0
        %1356 = vmatpush1.msra.mxu0 0.0
        %1357 = vmatprep.subr.mxu0 0.0
        %1358 = vmatpush1.msra.mxu0 0.0
        %1359 = vmatprep.subr.mxu0 0.0
        %1360 = vmatpush1.msra.mxu0 0.0
        %1361 = vmatprep.mubr.f32.mxu0 0.0
        %1362 = vmatmul.mubr.f32.gmra.mrb[0].mxu0 %v1295
        %v1363 = vpop.f32.mrb[0].mxu0
        %v1364 = vadd.f32 %v1292, %v1363
        %v1365 = vpop.f32.mrb[0].mxu0
        %1366 = vdwg.mxu0
        %v1367 = vmul.f32 %v1364, 1.442695
        %v1368 = vpow.pop %v1367
        %v1369 = vadd.f32 %v1368, 1.0
        %v1370 = vlog2.pop %v1369
        %v1371 = vmul.f32 %v1370, 0.6931472
        %v1372 = vmul.f32 -0.5, %v1368
        %v1373 = vadd.f32 %v1372, 1.0
        %v1374 = vmul.f32 %v1373, %v1368
        %v1375 = vand.u32 2147483647, %v1368
        %vm1376 = vcmp.lt.f32.partialorder %v1375, 0.0004427343
        %v1377 = vsel %vm1376, %v1374, %v1371
        %v1378 = vtanh.pop %v1377
        %v1379 = vmul.f32 %v1364, %v1378
        %v1380 = vld [vmem:[%s16] sm:$0xff]
        %v1381 = vld [vmem:[%s16 + $0x8] sm:$0xff]
        %v1382 = vld [vmem:[%s16 + $0x10] sm:$0xff]
        %v1383 = vld [vmem:[%s16 + $0x18] sm:$0xff]
        %v1384 = vld [vmem:[%s17] sm:$0x1]
        %v1386 = vlaneseq
        %v1387 = vshrl.u32 %v1386, 7
        %v1388 = vsub.s32 0, %v1387
        %v1389 = vrot.slane %v1384, %v1388
        %v1392 = vsel %vm965, %v1379, 0
        %1394 = vmatprep.subr.mxu0 0.0
        %1395 = vmatpush1.msra.mxu0 %v1380
        %1396 = vmatprep.subr.mxu0 0.0
        %1397 = vmatpush1.msra.mxu0 %v1381
        %1398 = vmatprep.subr.mxu0 0.0
        %1399 = vmatpush1.msra.mxu0 %v1382
        %1400 = vmatprep.subr.mxu0 0.0
        %1401 = vmatpush1.msra.mxu0 %v1383
        %1402 = vmatprep.subr.mxu0 0.0
        %1403 = vmatpush1.msra.mxu0 0.0
        %1404 = vmatprep.subr.mxu0 0.0
        %1405 = vmatpush1.msra.mxu0 0.0
        %1406 = vmatprep.subr.mxu0 0.0
        %1407 = vmatpush1.msra.mxu0 0.0
        %1408 = vmatprep.subr.mxu0 0.0
        %1409 = vmatpush1.msra.mxu0 0.0
        %1410 = vmatprep.subr.mxu0 0.0
        %1411 = vmatpush1.msra.mxu0 0.0
        %1412 = vmatprep.subr.mxu0 0.0
        %1413 = vmatpush1.msra.mxu0 0.0
        %1414 = vmatprep.subr.mxu0 0.0
        %1415 = vmatpush1.msra.mxu0 0.0
        %1416 = vmatprep.subr.mxu0 0.0
        %1417 = vmatpush1.msra.mxu0 0.0
        %1418 = vmatprep.subr.mxu0 0.0
        %1419 = vmatpush1.msra.mxu0 0.0
        %1420 = vmatprep.subr.mxu0 0.0
        %1421 = vmatpush1.msra.mxu0 0.0
        %1422 = vmatprep.subr.mxu0 0.0
        %1423 = vmatpush1.msra.mxu0 0.0
        %1424 = vmatprep.subr.mxu0 0.0
        %1425 = vmatpush1.msra.mxu0 0.0
        %1426 = vmatprep.subr.mxu0 0.0
        %1427 = vmatpush1.msra.mxu0 0.0
        %1428 = vmatprep.subr.mxu0 0.0
        %1429 = vmatpush1.msra.mxu0 0.0
        %1430 = vmatprep.subr.mxu0 0.0
        %1431 = vmatpush1.msra.mxu0 0.0
        %1432 = vmatprep.subr.mxu0 0.0
        %1433 = vmatpush1.msra.mxu0 0.0
        %1434 = vmatprep.subr.mxu0 0.0
        %1435 = vmatpush1.msra.mxu0 0.0
        %1436 = vmatprep.subr.mxu0 0.0
        %1437 = vmatpush1.msra.mxu0 0.0
        %1438 = vmatprep.subr.mxu0 0.0
        %1439 = vmatpush1.msra.mxu0 0.0
        %1440 = vmatprep.subr.mxu0 0.0
        %1441 = vmatpush1.msra.mxu0 0.0
        %1442 = vmatprep.subr.mxu0 0.0
        %1443 = vmatpush1.msra.mxu0 0.0
        %1444 = vmatprep.subr.mxu0 0.0
        %1445 = vmatpush1.msra.mxu0 0.0
        %1446 = vmatprep.subr.mxu0 0.0
        %1447 = vmatpush1.msra.mxu0 0.0
        %1448 = vmatprep.subr.mxu0 0.0
        %1449 = vmatpush1.msra.mxu0 0.0
        %1450 = vmatprep.subr.mxu0 0.0
        %1451 = vmatpush1.msra.mxu0 0.0
        %1452 = vmatprep.subr.mxu0 0.0
        %1453 = vmatpush1.msra.mxu0 0.0
        %1454 = vmatprep.subr.mxu0 0.0
        %1455 = vmatpush1.msra.mxu0 0.0
        %1456 = vmatprep.subr.mxu0 0.0
        %1457 = vmatpush1.msra.mxu0 0.0
        %1458 = vmatprep.mubr.f32.mxu0 0.0
        %1459 = vmatmul.mubr.f32.gmra.mrb[0].mxu0 %v1392
        %v1460 = vpop.f32.mrb[0].mxu0
        %v1461 = vadd.f32 %v1389, %v1460
        %v1462 = vpop.f32.mrb[0].mxu0
        %1463 = vdwg.mxu0
        %v1464 = vmul.f32 %v1461, 1.442695
        %v1465 = vpow.pop %v1464
        %v1466 = vadd.f32 %v1465, 1.0
        %v1467 = vlog2.pop %v1466
        %v1468 = vmul.f32 %v1467, 0.6931472
        %v1469 = vmul.f32 -0.5, %v1465
        %v1470 = vadd.f32 %v1469, 1.0
        %v1471 = vmul.f32 %v1470, %v1465
        %v1472 = vand.u32 2147483647, %v1465
        %vm1473 = vcmp.lt.f32.partialorder %v1472, 0.0004427343
        %v1474 = vsel %vm1473, %v1471, %v1468
        %v1475 = vtanh.pop %v1474
        %v1476 = vmul.f32 %v1461, %v1475
        %v1477 = vld [vmem:[%s18] sm:$0xff]
        %v1478 = vld [vmem:[%s18 + $0x8] sm:$0xff]
        %v1479 = vld [vmem:[%s18 + $0x10] sm:$0xff]
        %v1480 = vld [vmem:[%s18 + $0x18] sm:$0xff]
        %v1481 = vld [vmem:[%s19] sm:$0x1]
        %v1483 = vlaneseq
        %v1484 = vshrl.u32 %v1483, 7
        %v1485 = vsub.s32 0, %v1484
        %v1486 = vrot.slane %v1481, %v1485
        %v1489 = vsel %vm965, %v1476, 0
        %1491 = vmatprep.subr.mxu0 0.0
        %1492 = vmatpush1.msra.mxu0 %v1477
        %1493 = vmatprep.subr.mxu0 0.0
        %1494 = vmatpush1.msra.mxu0 %v1478
        %1495 = vmatprep.subr.mxu0 0.0
        %1496 = vmatpush1.msra.mxu0 %v1479
        %1497 = vmatprep.subr.mxu0 0.0
        %1498 = vmatpush1.msra.mxu0 %v1480
        %1499 = vmatprep.subr.mxu0 0.0
        %1500 = vmatpush1.msra.mxu0 0.0
        %1501 = vmatprep.subr.mxu0 0.0
        %1502 = vmatpush1.msra.mxu0 0.0
        %1503 = vmatprep.subr.mxu0 0.0
        %1504 = vmatpush1.msra.mxu0 0.0
        %1505 = vmatprep.subr.mxu0 0.0
        %1506 = vmatpush1.msra.mxu0 0.0
        %1507 = vmatprep.subr.mxu0 0.0
        %1508 = vmatpush1.msra.mxu0 0.0
        %1509 = vmatprep.subr.mxu0 0.0
        %1510 = vmatpush1.msra.mxu0 0.0
        %1511 = vmatprep.subr.mxu0 0.0
        %1512 = vmatpush1.msra.mxu0 0.0
        %1513 = vmatprep.subr.mxu0 0.0
        %1514 = vmatpush1.msra.mxu0 0.0
        %1515 = vmatprep.subr.mxu0 0.0
        %1516 = vmatpush1.msra.mxu0 0.0
        %1517 = vmatprep.subr.mxu0 0.0
        %1518 = vmatpush1.msra.mxu0 0.0
        %1519 = vmatprep.subr.mxu0 0.0
        %1520 = vmatpush1.msra.mxu0 0.0
        %1521 = vmatprep.subr.mxu0 0.0
        %1522 = vmatpush1.msra.mxu0 0.0
        %1523 = vmatprep.subr.mxu0 0.0
        %1524 = vmatpush1.msra.mxu0 0.0
        %1525 = vmatprep.subr.mxu0 0.0
        %1526 = vmatpush1.msra.mxu0 0.0
        %1527 = vmatprep.subr.mxu0 0.0
        %1528 = vmatpush1.msra.mxu0 0.0
        %1529 = vmatprep.subr.mxu0 0.0
        %1530 = vmatpush1.msra.mxu0 0.0
        %1531 = vmatprep.subr.mxu0 0.0
        %1532 = vmatpush1.msra.mxu0 0.0
        %1533 = vmatprep.subr.mxu0 0.0
        %1534 = vmatpush1.msra.mxu0 0.0
        %1535 = vmatprep.subr.mxu0 0.0
        %1536 = vmatpush1.msra.mxu0 0.0
        %1537 = vmatprep.subr.mxu0 0.0
        %1538 = vmatpush1.msra.mxu0 0.0
        %1539 = vmatprep.subr.mxu0 0.0
        %1540 = vmatpush1.msra.mxu0 0.0
        %1541 = vmatprep.subr.mxu0 0.0
        %1542 = vmatpush1.msra.mxu0 0.0
        %1543 = vmatprep.subr.mxu0 0.0
        %1544 = vmatpush1.msra.mxu0 0.0
        %1545 = vmatprep.subr.mxu0 0.0
        %1546 = vmatpush1.msra.mxu0 0.0
        %1547 = vmatprep.subr.mxu0 0.0
        %1548 = vmatpush1.msra.mxu0 0.0
        %1549 = vmatprep.subr.mxu0 0.0
        %1550 = vmatpush1.msra.mxu0 0.0
        %1551 = vmatprep.subr.mxu0 0.0
        %1552 = vmatpush1.msra.mxu0 0.0
        %1553 = vmatprep.subr.mxu0 0.0
        %1554 = vmatpush1.msra.mxu0 0.0
        %1555 = vmatprep.mubr.f32.mxu0 0.0
        %1556 = vmatmul.mubr.f32.gmra.mrb[0].mxu0 %v1489
        %v1557 = vpop.f32.mrb[0].mxu0
        %v1558 = vadd.f32 %v1486, %v1557
        %v1559 = vpop.f32.mrb[0].mxu0
        %1560 = vdwg.mxu0
        %v1561 = vstv %s748
        %v1562 = vmul.f32 %v1561, %v745
        %v1563 = vstv %s750
        %v1564 = vmul.f32 %v1563, %v1558
        %v1565 = vsub.f32 %v1562, %v1564
        %v1566 = vmax.f32 %v1565, -1.0
        %v1567 = vmin.f32 %v1566, 1.0
        %v1568 = vstv %s752
        %v1569 = vmul.f32 %v1568, %v745
        %v1570 = vstv %s754
        %v1571 = vmul.f32 %v1570, %v1567
        %v1572 = vadd.f32 %v1569, %v1571
        %s1573 = smul.f32 %s756, %s758
        %v1574 = vld [vmem:[%s737] sm:$0xff]
        %v1575 = vstv %s1573
        %v1576 = vmul.f32 %v1575, %v1574
        %v1577 = vadd.f32 %v1572, %v1576
        %1578 = vst.msk [vmem:[#allocation18] sm:$0xff] %vm1191, %v1577
        %p1579 = scmp.eq.s32.totalorder %s46, 4
        // Predicated region
        $region133: #{tpu_custom_call.1} parent=95 // pred_check
          %p1580 = pneg %p1579
        $region134: #{tpu_custom_call.1} parent=95 // pred_check_branch
          %1582 = sbr.rel (%p1580) target = $region136
        $region135: #{tpu_custom_call.1} parent=95 // pred_region
          %v1583 = vmax.f32 %v1577, -1.0
          %v1584 = vmin.f32 %v1583, 1.0
          %1585 = vst.msk [vmem:[#allocation18] sm:$0xff] %vm1191, %v1584
        $region136: #{tpu_custom_call.1} parent=95 // pred_fallthru
          _
        // Predicated region
        $region137: #{tpu_custom_call.1} parent=95 // pred_check
          %p1586 = pneg %p487
        $region138: #{tpu_custom_call.1} parent=95 // pred_check_branch
          %1588 = sbr.rel (%p1586) target = $region140
        $region139: #{tpu_custom_call.1} parent=95 // pred_region
          %s1590 = ssub.s32 128, 128
          %1591 = vsyncadd [#allocation6], %s1590
          %s1592 = smul.addr %s45, 128
          %s1593 = scalar_lea.hbm %s20, %s1592
          %s1595 = sshll.u32 [#allocation18], 4
          %s1596 = int_to_ptr.vmem [resolvable:$true] %s1595
          %1598 = dma.vmem_to_hbm [thread:$0]  %s1596, 128, %s1593, [#allocation6]
        $region140: #{tpu_custom_call.1} parent=95 // pred_fallthru
          _
        // Predicated region
        $region141: #{tpu_custom_call.1} parent=95 // pred_check
          %p1599 = pneg %p487
        $region142: #{tpu_custom_call.1} parent=95 // pred_check_branch
          %1601 = sbr.rel (%p1599) target = $region144
        $region143: #{tpu_custom_call.1} parent=95 // pred_region
          %1602 = dma.done [#allocation6], 128
        $region144: #{tpu_custom_call.1} parent=95 // pred_fallthru
          _
      $region96: #{tpu_custom_call.1} parent=5 // pred_fallthru
        _
      %p1603 = scmp.le.s32.totalorder 2, %s36
      // Predicated region
      $region145: #{tpu_custom_call.1} parent=5 // pred_check
        %p1604 = pneg %p1603
      $region146: #{tpu_custom_call.1} parent=5 // pred_check_branch
        %1606 = sbr.rel (%p1604) target = $region148
      $region147: #{tpu_custom_call.1} parent=5 // pred_region
        %s1607 = ssub.s32 %s36, 2
      $region148: #{tpu_custom_call.1} parent=5 // pred_fallthru
        _
    $region6: #{tpu_custom_call.1} parent=1 // loop_footer
      %s40 = sadd.s32 1, %s36
    $region7: #{tpu_custom_call.1} parent=1 // loop_footer_branch
      %35 = sbr.rel target = $region3
    $region8: #{tpu_custom_call.1} parent=1 // loop_exit
      _
    %1608 = vsyncpa [#allocation5], 1
    %s1609 = scalar_lea.sflag [#allocation5], 1
    %1610 = vsyncpa %s1609, 1
    %1611 = vsyncpa [#allocation8], 1
    %1612 = vsyncpa [#allocation11], 1
    %1613 = vsyncpa [#allocation14], 1
    %1614 = vsyncpa [#allocation17], 1
    %1615 = vsyncpa [#allocation6], 1
    %s1616 = scalar_lea.sflag [#allocation6], 1
    %1617 = vsyncpa %s1616, 1

</llo_original>
